<compile_context>
chip_gen: v6e
topology: v6e:2x2x1
jax: 0.10.0
libtpu: 0.0.40
codegen_flags: <defaults>
</compile_context>

<pallas_src>
import jax
import jax.numpy as jnp
from jax.experimental import pallas as pl
from jax.experimental.pallas import tpu as pltpu

HIDDEN = 512  # conv1 output channels, fixed by the module


def _attention_kernel(x_ref, w1_ref, b1_ref, w2_ref, b2_ref, o_ref):
    # x_ref : (1, C_in, T)  bf16  channels-major pixel slab (straight from NCHW)
    # w1_ref: (512, C_in)   bf16  conv1 weight^T with BN1 scale folded in (resident)
    # b1_ref: (512, 1)      f32   folded BN1 shift
    # w2_ref: (C_out, 512)  bf16  conv2 weight^T with BN2 scale folded in (resident)
    # b2_ref: (C_out, 1)    f32   folded BN2 shift
    # o_ref : (1, C_out, T) f32
    x = x_ref[0]                                                     # (C_in, T)
    h = jnp.dot(w1_ref[...], x, preferred_element_type=jnp.float32)  # (512, T) f32
    h = jnp.maximum(h + b1_ref[...], 0.0)                            # BN1 shift + ReLU
    y = jnp.dot(w2_ref[...], h.astype(w2_ref.dtype),
                preferred_element_type=jnp.float32)                  # (C_out, T) f32
    y = jnp.maximum(y + b2_ref[...], 0.0)                            # BN2 shift + ReLU
    o_ref[0] = y.astype(o_ref.dtype)


def attention_forward(x_nchw, params, *, t_hw=512):
    """x_nchw: (N, C_in, H, W) float32.  Returns (N, C_out, H, W) float32."""
    N, C_in, H, W = x_nchw.shape
    w1, s1, b1, w2, s2, b2 = params
    C_out = w2.shape[1]
    HW = H * W

    # Fold BN scales into the matmul weights (BN is linear), transpose to
    # channels-major, and cast matmul operands to bf16 (accumulate in f32).
    w1t = (w1 * s1).T.astype(jnp.bfloat16)            # (512, C_in)
    w2t = (w2 * s2).T.astype(jnp.bfloat16)            # (C_out, 512)
    b1c = b1.reshape(HIDDEN, 1).astype(jnp.float32)   # (512, 1)
    b2c = b2.reshape(C_out, 1).astype(jnp.float32)    # (C_out, 1)

    # NCHW -> (N, C_in, H*W): a pure reshape, no transpose / extra HBM pass.
    x3d = x_nchw.reshape(N, C_in, HW).astype(jnp.bfloat16)

    # Lane-dense spatial tile: multiple of 128, capped at t_hw; pad the tail tile.
    t = min(t_hw, pl.cdiv(HW, 128) * 128)
    hw_pad = pl.cdiv(HW, t) * t
    if hw_pad != HW:
        x3d = jnp.pad(x3d, ((0, 0), (0, 0), (0, hw_pad - HW)))

    grid = (N, hw_pad // t)
    out3d = pl.pallas_call(
        _attention_kernel,
        out_shape=jax.ShapeDtypeStruct((N, C_out, hw_pad), jnp.float32),
        grid_spec=pltpu.PrefetchScalarGridSpec(
            num_scalar_prefetch=0,
            grid=grid,
            in_specs=[
                pl.BlockSpec((1, C_in, t), lambda n, j: (n, 0, j)),    # x slab
                pl.BlockSpec((HIDDEN, C_in), lambda n, j: (0, 0)),     # w1^T (resident)
                pl.BlockSpec((HIDDEN, 1), lambda n, j: (0, 0)),        # b1
                pl.BlockSpec((C_out, HIDDEN), lambda n, j: (0, 0)),    # w2^T (resident)
                pl.BlockSpec((C_out, 1), lambda n, j: (0, 0)),         # b2
            ],
            out_specs=pl.BlockSpec((1, C_out, t), lambda n, j: (n, 0, j)),
        ),
        compiler_params=pltpu.CompilerParams(
            dimension_semantics=("parallel", "parallel"),
            vmem_limit_bytes=32 * 1024 * 1024,   # fits v5e/v6e/v7x scoped VMEM
        ),
    )(x3d, w1t, b1c, w2t, b2c)

    if hw_pad != HW:
        out3d = out3d[:, :, :HW]
    return out3d.reshape(N, C_out, H, W)


def make_params(key, in_channels, out_channels, eps=1e-3):
    """Deterministic synthetic parameters matching the PyTorch module's shapes.

    conv weights: torch (C_out, C_in, 1, 1) -> stored as (C_in, C_out) matmul
    weights; BN params folded into per-channel scale/shift (inference semantics)."""
    ks = jax.random.split(key, 10)

    def bn_fold(kg, kb, km, kv, c):
        gamma = jax.random.uniform(kg, (c,), jnp.float32, 0.5, 1.5)
        beta = jax.random.normal(kb, (c,), jnp.float32) * 0.1
        mean = jax.random.normal(km, (c,), jnp.float32) * 0.1
        var = jax.random.uniform(kv, (c,), jnp.float32, 0.5, 1.5)
        scale = gamma / jnp.sqrt(var + eps)
        shift = beta - mean * scale
        return scale, shift

    w1 = jax.random.normal(ks[0], (in_channels, HIDDEN), jnp.float32) * 0.05
    s1, b1 = bn_fold(ks[1], ks[2], ks[3], ks[4], HIDDEN)
    w2 = jax.random.normal(ks[5], (HIDDEN, out_channels), jnp.float32) * 0.05
    s2, b2 = bn_fold(ks[6], ks[7], ks[8], ks[9], out_channels)
    return (w1, s1, b1, w2, s2, b2)


def attention_reference(x_nchw, params):
    """Pure-JAX f32 reference of the same forward (for a sanity check)."""
    w1, s1, b1, w2, s2, b2 = params
    N, C_in, H, W = x_nchw.shape
    x2d = jnp.transpose(x_nchw, (0, 2, 3, 1)).reshape(-1, C_in)
    h = jnp.maximum(x2d @ w1 * s1 + b1, 0.0)
    y = jnp.maximum(h @ w2 * s2 + b2, 0.0)
    C_out = w2.shape[1]
    return jnp.transpose(y.reshape(N, H, W, C_out), (0, 3, 1, 2))


if __name__ == "__main__":
    key = jax.random.PRNGKey(0)
    kx, kp = jax.random.split(key)

    # Small shapes consistent with the module: N=2, C_in=4, H=W=16, C_out=32.
    N, C_in, H, W, C_out = 2, 4, 16, 16, 32
    x = jax.random.normal(kx, (N, C_in, H, W), jnp.float32)
    params = make_params(kp, C_in, C_out)

    out = jax.block_until_ready(attention_forward(x, params))
    ref = attention_reference(x, params)

    assert out.shape == (N, C_out, H, W)
    # bf16 matmul operands with f32 accumulation -> loosened tolerance vs f32 ref.
    assert jnp.allclose(out, ref, atol=2e-2, rtol=2e-2), float(jnp.max(jnp.abs(out - ref)))

    print("KERNEL_OK")
</pallas_src>

<mosaic_0001>
module attributes {stable_mosaic.version = 11 : i64} {
  func.func @_attention_kernel(%arg0: i32, %arg1: i32, %arg2: memref<1x4x256xbf16, #tpu.memory_space<vmem>>, %arg3: memref<512x4xbf16, #tpu.memory_space<vmem>>, %arg4: memref<512x1xf32, #tpu.memory_space<vmem>>, %arg5: memref<32x512xbf16, #tpu.memory_space<vmem>>, %arg6: memref<32x1xf32, #tpu.memory_space<vmem>>, %arg7: memref<1x32x256xf32, #tpu.memory_space<vmem>>) attributes {dimension_semantics = [#tpu.dimension_semantics<parallel>, #tpu.dimension_semantics<parallel>], iteration_bounds = array<i64: 2, 1>, scalar_prefetch = 0 : i64, scratch_operands = 0 : i64, tpu.core_type = #tpu.core_type<tc>, window_params = [{transform_indices = @transform_0, window_bounds = array<i64: 1, 4, 256>}, {pipeline_mode = #tpu.pipeline_mode<synchronous>, transform_indices = @transform_1, window_bounds = array<i64: 512, 4>}, {pipeline_mode = #tpu.pipeline_mode<synchronous>, transform_indices = @transform_2, window_bounds = array<i64: 512, 1>}, {pipeline_mode = #tpu.pipeline_mode<synchronous>, transform_indices = @transform_3, window_bounds = array<i64: 32, 512>}, {pipeline_mode = #tpu.pipeline_mode<synchronous>, transform_indices = @transform_4, window_bounds = array<i64: 32, 1>}, {transform_indices = @transform_5, window_bounds = array<i64: 1, 32, 256>}]} {
    %c0 = arith.constant 0 : index
    %c0_0 = arith.constant 0 : index
    %c0_1 = arith.constant 0 : index
    %0 = vector.load %arg2[%c0, %c0_0, %c0_1] : memref<1x4x256xbf16, #tpu.memory_space<vmem>>, vector<1x4x256xbf16>
    %1 = vector.shape_cast %0 : vector<1x4x256xbf16> to vector<4x256xbf16>
    %c0_2 = arith.constant 0 : index
    %c0_3 = arith.constant 0 : index
    %2 = vector.load %arg3[%c0_2, %c0_3] : memref<512x4xbf16, #tpu.memory_space<vmem>>, vector<512x4xbf16>
    %cst = arith.constant dense<0.000000e+00> : vector<512x256xf32>
    %3 = tpu.matmul %2, %1, %cst {dimension_numbers = #tpu.dot_dimension_numbers<[1], [0], [0], [1], [0, 0, 1, 1], [], []>} : vector<512x4xbf16>, vector<4x256xbf16>, vector<512x256xf32> -> vector<512x256xf32>
    %c0_4 = arith.constant 0 : index
    %c0_5 = arith.constant 0 : index
    %4 = vector.load %arg4[%c0_4, %c0_5] : memref<512x1xf32, #tpu.memory_space<vmem>>, vector<512x1xf32>
    %5 = vector.broadcast %4 : vector<512x1xf32> to vector<512x256xf32>
    %6 = arith.addf %3, %5 : vector<512x256xf32>
    %cst_6 = arith.constant 0.000000e+00 : f32
    %7 = vector.broadcast %cst_6 : f32 to vector<512x256xf32>
    %8 = arith.maximumf %6, %7 : vector<512x256xf32>
    %c0_7 = arith.constant 0 : index
    %c0_8 = arith.constant 0 : index
    %9 = vector.load %arg5[%c0_7, %c0_8] : memref<32x512xbf16, #tpu.memory_space<vmem>>, vector<32x512xbf16>
    %10 = arith.truncf %8 : vector<512x256xf32> to vector<512x256xbf16>
    %cst_9 = arith.constant dense<0.000000e+00> : vector<32x256xf32>
    %11 = tpu.matmul %9, %10, %cst_9 {dimension_numbers = #tpu.dot_dimension_numbers<[1], [0], [0], [1], [0, 0, 1, 1], [], []>} : vector<32x512xbf16>, vector<512x256xbf16>, vector<32x256xf32> -> vector<32x256xf32>
    %c0_10 = arith.constant 0 : index
    %c0_11 = arith.constant 0 : index
    %12 = vector.load %arg6[%c0_10, %c0_11] : memref<32x1xf32, #tpu.memory_space<vmem>>, vector<32x1xf32>
    %13 = vector.broadcast %12 : vector<32x1xf32> to vector<32x256xf32>
    %14 = arith.addf %11, %13 : vector<32x256xf32>
    %cst_12 = arith.constant 0.000000e+00 : f32
    %15 = vector.broadcast %cst_12 : f32 to vector<32x256xf32>
    %16 = arith.maximumf %14, %15 : vector<32x256xf32>
    %c0_13 = arith.constant 0 : index
    %c0_14 = arith.constant 0 : index
    %c0_15 = arith.constant 0 : index
    %17 = vector.load %arg7[%c0_13, %c0_14, %c0_15] : memref<1x32x256xf32, #tpu.memory_space<vmem>>, vector<1x32x256xf32>
    %18 = vector.shape_cast %17 : vector<1x32x256xf32> to vector<32x256xf32>
    %19 = vector.shape_cast %16 : vector<32x256xf32> to vector<1x32x256xf32>
    tpu.vector_store %arg7[%c0_13, %c0_14, %c0_15], %19 {strides = array<i32>} : memref<1x32x256xf32, #tpu.memory_space<vmem>>, vector<1x32x256xf32>,
    return
  }
  func.func @transform_0(%arg0: i32, %arg1: i32) -> (i32, i32, i32) {
    %c0_i32 = arith.constant 0 : i32
    %c0_i32_0 = arith.constant 0 : i32
    return %arg0, %c0_i32, %arg1 : i32, i32, i32
  }
  func.func @transform_1(%arg0: i32, %arg1: i32) -> (i32, i32) {
    %c0_i32 = arith.constant 0 : i32
    %c0_i32_0 = arith.constant 0 : i32
    %c0_i32_1 = arith.constant 0 : i32
    return %c0_i32, %c0_i32_0 : i32, i32
  }
  func.func @transform_2(%arg0: i32, %arg1: i32) -> (i32, i32) {
    %c0_i32 = arith.constant 0 : i32
    %c0_i32_0 = arith.constant 0 : i32
    %c0_i32_1 = arith.constant 0 : i32
    return %c0_i32, %c0_i32_0 : i32, i32
  }
  func.func @transform_3(%arg0: i32, %arg1: i32) -> (i32, i32) {
    %c0_i32 = arith.constant 0 : i32
    %c0_i32_0 = arith.constant 0 : i32
    %c0_i32_1 = arith.constant 0 : i32
    return %c0_i32, %c0_i32_0 : i32, i32
  }
  func.func @transform_4(%arg0: i32, %arg1: i32) -> (i32, i32) {
    %c0_i32 = arith.constant 0 : i32
    %c0_i32_0 = arith.constant 0 : i32
    %c0_i32_1 = arith.constant 0 : i32
    return %c0_i32, %c0_i32_0 : i32, i32
  }
  func.func @transform_5(%arg0: i32, %arg1: i32) -> (i32, i32, i32) {
    %c0_i32 = arith.constant 0 : i32
    %c0_i32_0 = arith.constant 0 : i32
    return %arg0, %c0_i32, %arg1 : i32, i32, i32
  }
}

</mosaic_0001>

<llo_original>
// kernel: tpu_custom_call.1
$region0: #{tpu_custom_call.1}
  #allocation0 [shape = 'u32[]', space=smem, size = 0x4, offset = 0x4, fixed_abs, tag = 'smem constant byte address 0x4 - core index']
  #allocation1 [shape = 'u32[144,128]{1,0:T(1,128)}', space=vmem, size = 0x12000, scoped, tag = 'internal scratch']
  %s0 = inlined_call_operand.vmem [shape: bf16[2,4,256], index: 0, kind: input, shape index: {}]
  %s1 = inlined_call_operand.vmem [shape: bf16[512,4], index: 1, kind: input, shape index: {}]
  %s2 = inlined_call_operand.vmem [shape: f32[512,1], index: 2, kind: input, shape index: {}]
  %s3 = inlined_call_operand.vmem [shape: bf16[32,512], index: 3, kind: input, shape index: {}]
  %s4 = inlined_call_operand.vmem [shape: f32[32,1], index: 4, kind: input, shape index: {}]
  %s5 = inlined_call_operand.hbm [shape: f32[2,32,256], index: 5, kind: output, shape index: {}]
  %s6 = sld [smem:[#allocation0]]
  $region53: #{tpu_custom_call.1} parent=0
    _
  %s8 = ssub.s32 1, %s6
  %s9 = scalar_select 0, %s8, %s6
  $region1: #{tpu_custom_call.1} parent=0
    #allocation2 [shape = 'u8[65536]{0}', space=vmem, size = 0x10000, scoped, tag = 'output window, operand 0']
    #allocation3 [shape = 's32[2]{0}', space=sflag, size = 0x8, scoped, tag = 'scoped memory for tpu_custom_call.1']
    %10 = vsyncpa [#allocation3], 0
    %s11 = scalar_lea.sflag [#allocation3], 1
    %12 = vsyncpa %s11, 0
    loop: start=0, step=1, limit=4
    $region2: #{tpu_custom_call.1} parent=1 // loop_pre_header
      _
    $region3: #{tpu_custom_call.1} parent=1 // loop_header
      %s14 = sphi 0, %s18
      %p15 = scmp.ge.s32.totalorder %s14, 4
      %s21 = sphi 0, %s33
      %s22 = sphi 0, %s29
      %s23 = sphi 0, %s21
      %s24 = sphi 0, %s22
      %s25 = sphi 0, %s23
      %s26 = sphi 0, %s24
      %s38 = sphi 0, %s40
      %s41 = sphi 0, %s38
      %s42 = sphi 0, %s41
      %s58 = sphi 0, %s42
      %s62 = sphi 0, %s62
      %s64 = sphi 0, %s62
      %s65 = sphi 0, %s64
      %s79 = sphi 0, %s65
      %s83 = sphi 0, %s83
      %s85 = sphi 0, %s83
      %s86 = sphi 0, %s85
      %s100 = sphi 0, %s86
      %s104 = sphi 0, %s104
      %s106 = sphi 0, %s104
      %s107 = sphi 0, %s106
      %s121 = sphi 0, %s107
      %s125 = sphi 0, %s125
      %s127 = sphi 0, %s125
      %s128 = sphi 0, %s127
      %s142 = sphi 0, %s128
      %s150 = sphi 0, %s152
      %s153 = sphi 0, %s150
      %s154 = sphi 0, %s153
      %s170 = sphi 0, %s154
    $region4: #{tpu_custom_call.1} parent=1 // loop_header_branch
      %17 = sbr.rel (%p15) target = $region8
    $region5: #{tpu_custom_call.1} parent=1 // loop_body
      %s19 = ssub.s32 %s14, 1
      %s20 = ssub.s32 %s14, 2
      %s27 = sadd.s32 1, %s22
      %p28 = scmp.ge.s32.totalorder %s27, 1
      %s29 = scalar_select %p28, 0, %s27
      %s30 = sadd.s32 1, %s21
      %s31 = scalar_select %p28, %s30, %s21
      %p32 = scmp.ge.s32.totalorder %s31, 2
      %s33 = scalar_select %p32, 0, %s31
      %s34 = ssub.s32 %s21, %s33
      %s35 = ssub.s32 %s22, %s29
      %s36 = sor.u32 %s34, %s35
      %p37 = scmp.eq.s32.totalorder %s36, 0
      %s39 = sadd.s32 %s38, 1
      %s40 = scalar_select %p37, %s38, %s39
      %p43 = pneg %p37
      %p44 = scmp.eq.s32.totalorder %s14, 1
      %p45 = por %p43, %p44
      %p46 = scmp.ne.s32.totalorder %s38, %s41
      %p47 = scmp.eq.s32.totalorder %s14, 0
      %p48 = por %p46, %p47
      %p49 = scmp.ne.s32.totalorder %s38, %s41
      %p50 = scmp.eq.s32.totalorder %s19, 1
      %p51 = por %p49, %p50
      %p52 = scmp.ne.s32.totalorder %s41, %s42
      %p53 = scmp.eq.s32.totalorder %s19, 0
      %p54 = por %p52, %p53
      %p55 = scmp.ne.s32.totalorder %s41, %s42
      %p56 = scmp.eq.s32.totalorder %s20, 1
      %p57 = por %p55, %p56
      %p59 = scmp.ne.s32.totalorder %s42, %s58
      %p60 = scmp.eq.s32.totalorder %s20, 0
      %p61 = por %p59, %p60
      %s63 = sadd.s32 %s62, 1
      %p66 = scmp.eq.s32.totalorder %s14, 1
      %p67 = scmp.ne.s32.totalorder %s62, %s64
      %p68 = scmp.eq.s32.totalorder %s14, 0
      %p69 = por %p67, %p68
      %p70 = scmp.ne.s32.totalorder %s62, %s64
      %p71 = scmp.eq.s32.totalorder %s19, 1
      %p72 = por %p70, %p71
      %p73 = scmp.ne.s32.totalorder %s64, %s65
      %p74 = scmp.eq.s32.totalorder %s19, 0
      %p75 = por %p73, %p74
      %p76 = scmp.ne.s32.totalorder %s64, %s65
      %p77 = scmp.eq.s32.totalorder %s20, 1
      %p78 = por %p76, %p77
      %p80 = scmp.ne.s32.totalorder %s65, %s79
      %p81 = scmp.eq.s32.totalorder %s20, 0
      %p82 = por %p80, %p81
      %s84 = sadd.s32 %s83, 1
      %p87 = scmp.eq.s32.totalorder %s14, 1
      %p88 = scmp.ne.s32.totalorder %s83, %s85
      %p89 = scmp.eq.s32.totalorder %s14, 0
      %p90 = por %p88, %p89
      %p91 = scmp.ne.s32.totalorder %s83, %s85
      %p92 = scmp.eq.s32.totalorder %s19, 1
      %p93 = por %p91, %p92
      %p94 = scmp.ne.s32.totalorder %s85, %s86
      %p95 = scmp.eq.s32.totalorder %s19, 0
      %p96 = por %p94, %p95
      %p97 = scmp.ne.s32.totalorder %s85, %s86
      %p98 = scmp.eq.s32.totalorder %s20, 1
      %p99 = por %p97, %p98
      %p101 = scmp.ne.s32.totalorder %s86, %s100
      %p102 = scmp.eq.s32.totalorder %s20, 0
      %p103 = por %p101, %p102
      %s105 = sadd.s32 %s104, 1
      %p108 = scmp.eq.s32.totalorder %s14, 1
      %p109 = scmp.ne.s32.totalorder %s104, %s106
      %p110 = scmp.eq.s32.totalorder %s14, 0
      %p111 = por %p109, %p110
      %p112 = scmp.ne.s32.totalorder %s104, %s106
      %p113 = scmp.eq.s32.totalorder %s19, 1
      %p114 = por %p112, %p113
      %p115 = scmp.ne.s32.totalorder %s106, %s107
      %p116 = scmp.eq.s32.totalorder %s19, 0
      %p117 = por %p115, %p116
      %p118 = scmp.ne.s32.totalorder %s106, %s107
      %p119 = scmp.eq.s32.totalorder %s20, 1
      %p120 = por %p118, %p119
      %p122 = scmp.ne.s32.totalorder %s107, %s121
      %p123 = scmp.eq.s32.totalorder %s20, 0
      %p124 = por %p122, %p123
      %s126 = sadd.s32 %s125, 1
      %p129 = scmp.eq.s32.totalorder %s14, 1
      %p130 = scmp.ne.s32.totalorder %s125, %s127
      %p131 = scmp.eq.s32.totalorder %s14, 0
      %p132 = por %p130, %p131
      %p133 = scmp.ne.s32.totalorder %s125, %s127
      %p134 = scmp.eq.s32.totalorder %s19, 1
      %p135 = por %p133, %p134
      %p136 = scmp.ne.s32.totalorder %s127, %s128
      %p137 = scmp.eq.s32.totalorder %s19, 0
      %p138 = por %p136, %p137
      %p139 = scmp.ne.s32.totalorder %s127, %s128
      %p140 = scmp.eq.s32.totalorder %s20, 1
      %p141 = por %p139, %p140
      %p143 = scmp.ne.s32.totalorder %s128, %s142
      %p144 = scmp.eq.s32.totalorder %s20, 0
      %p145 = por %p143, %p144
      %s146 = ssub.s32 %s21, %s33
      %s147 = ssub.s32 %s22, %s29
      %s148 = sor.u32 %s146, %s147
      %p149 = scmp.eq.s32.totalorder %s148, 0
      %s151 = sadd.s32 %s150, 1
      %s152 = scalar_select %p149, %s150, %s151
      %p155 = pneg %p149
      %p156 = scmp.eq.s32.totalorder %s14, 1
      %p157 = por %p155, %p156
      %p158 = scmp.ne.s32.totalorder %s150, %s153
      %p159 = scmp.eq.s32.totalorder %s14, 0
      %p160 = por %p158, %p159
      %p161 = scmp.ne.s32.totalorder %s150, %s153
      %p162 = scmp.eq.s32.totalorder %s19, 1
      %p163 = por %p161, %p162
      %p164 = scmp.ne.s32.totalorder %s153, %s154
      %p165 = scmp.eq.s32.totalorder %s19, 0
      %p166 = por %p164, %p165
      %p167 = scmp.ne.s32.totalorder %s153, %s154
      %p168 = scmp.eq.s32.totalorder %s20, 1
      %p169 = por %p167, %p168
      %p171 = scmp.ne.s32.totalorder %s154, %s170
      %p172 = scmp.eq.s32.totalorder %s20, 0
      %p173 = por %p171, %p172
      %p174 = scmp.le.s32.totalorder 1, %s14
      %p175 = scmp.lt.s32.totalorder %s14, 3
      %p176 = pnand %p174, %p175
      %p177 = pneg %p176
      // Predicated region
      $region9: #{tpu_custom_call.1} parent=5 // pred_check
        _
      $region10: #{tpu_custom_call.1} parent=5 // pred_check_branch
        %179 = sbr.rel (%p176) target = $region12
      $region11: #{tpu_custom_call.1} parent=5 // pred_region
        %s180 = ssub.s32 %s14, 1
        // Predicated region
        $region13: #{tpu_custom_call.1} parent=11 // pred_check
          %p181 = pneg %p75
        $region14: #{tpu_custom_call.1} parent=11 // pred_check_branch
          %183 = sbr.rel (%p181) target = $region16
        $region15: #{tpu_custom_call.1} parent=11 // pred_region
          _
        $region16: #{tpu_custom_call.1} parent=11 // pred_fallthru
          _
        // Predicated region
        $region17: #{tpu_custom_call.1} parent=11 // pred_check
          %p184 = pneg %p96
        $region18: #{tpu_custom_call.1} parent=11 // pred_check_branch
          %186 = sbr.rel (%p184) target = $region20
        $region19: #{tpu_custom_call.1} parent=11 // pred_region
          _
        $region20: #{tpu_custom_call.1} parent=11 // pred_fallthru
          _
        // Predicated region
        $region21: #{tpu_custom_call.1} parent=11 // pred_check
          %p187 = pneg %p117
        $region22: #{tpu_custom_call.1} parent=11 // pred_check_branch
          %189 = sbr.rel (%p187) target = $region24
        $region23: #{tpu_custom_call.1} parent=11 // pred_region
          _
        $region24: #{tpu_custom_call.1} parent=11 // pred_fallthru
          _
        // Predicated region
        $region25: #{tpu_custom_call.1} parent=11 // pred_check
          %p190 = pneg %p138
        $region26: #{tpu_custom_call.1} parent=11 // pred_check_branch
          %192 = sbr.rel (%p190) target = $region28
        $region27: #{tpu_custom_call.1} parent=11 // pred_region
          _
        $region28: #{tpu_custom_call.1} parent=11 // pred_fallthru
          _
      $region12: #{tpu_custom_call.1} parent=5 // pred_fallthru
        _
      %p193 = scmp.lt.s32.totalorder %s14, 2
      // Predicated region
      $region29: #{tpu_custom_call.1} parent=5 // pred_check
        %p194 = pneg %p193
      $region30: #{tpu_custom_call.1} parent=5 // pred_check_branch
        %196 = sbr.rel (%p194) target = $region32
      $region31: #{tpu_custom_call.1} parent=5 // pred_region
        // Predicated region
        $region33: #{tpu_custom_call.1} parent=31 // pred_check
          %p197 = pneg %p48
        $region34: #{tpu_custom_call.1} parent=31 // pred_check_branch
          %199 = sbr.rel (%p197) target = $region36
        $region35: #{tpu_custom_call.1} parent=31 // pred_region
          %s200 = smul.u32 2, %s22
          %p201 = scmp.lt.s32.totalorder %s21, 1
          %s202 = scalar_select %p201, %s21, 1
          %p203 = scmp.lt.s32.totalorder %s200, 1
          %s204 = scalar_select %p203, %s200, 1
          %s205 = smul.addr %s202, 2
          %s206 = sadd.s32 %s204, %s205
          %s207 = smul.addr %s206, 2
          %s208 = scalar_lea.vmem %s0, %s207
          %s209 = smul.u32 2, %s22
        $region36: #{tpu_custom_call.1} parent=31 // pred_fallthru
          _
      $region32: #{tpu_custom_call.1} parent=5 // pred_fallthru
        _
      %p210 = scmp.le.s32.totalorder 1, %s14
      %p211 = scmp.lt.s32.totalorder %s14, 3
      %p212 = pnand %p210, %p211
      %p213 = pneg %p212
      // Predicated region
      $region37: #{tpu_custom_call.1} parent=5 // pred_check
        _
      $region38: #{tpu_custom_call.1} parent=5 // pred_check_branch
        %215 = sbr.rel (%p212) target = $region40
      $region39: #{tpu_custom_call.1} parent=5 // pred_region
        %s216 = ssub.s32 %s14, 1
        %s217 = smul.u32 2, %s24
        %p218 = scmp.lt.s32.totalorder %s23, 1
        %s219 = scalar_select %p218, %s23, 1
        %p220 = scmp.lt.s32.totalorder %s217, 1
        %s221 = scalar_select %p220, %s217, 1
        %s222 = smul.addr %s219, 2
        %s223 = sadd.s32 %s221, %s222
        %s224 = smul.addr %s223, 2
        %s225 = scalar_lea.vmem %s0, %s224
        %p226 = pneg %p54
        %p227 = pneg %p51
        %p228 = pneg %p75
        %p229 = pneg %p72
        %p230 = pneg %p96
        %p231 = pneg %p93
        %p232 = pneg %p117
        %p233 = pneg %p114
        %p234 = pneg %p138
        %p235 = pneg %p135
        %p236 = pneg %p166
        %p237 = pneg %p163
        %s238 = sand.u32 %s153, 1
        %s239 = scalar_lea.sflag [#allocation3], %s238
        %s240 = sand.u32 %s153, 1
        %s241 = smul.addr %s240, 64
        %s242 = scalar_lea.vmem [#allocation2], %s241
        %s243 = smul.u32 2, %s24
        %p244 = scmp.lt.s32.totalorder %s23, 1
        %s245 = scalar_select %p244, %s23, 1
        %p246 = scmp.lt.s32.totalorder %s243, 1
        %s247 = scalar_select %p246, %s243, 1
        %s248 = smul.addr %s245, 2
        %s249 = sadd.s32 %s247, %s248
        %s250 = smul.addr %s249, 2
        %s251 = scalar_lea.vmem %s0, %s250
        %s252 = smul.u32 2, %s24
        %s253 = smul.u32 2, %s24
        %v255 = vld [vmem:[%s251] sm:$0xf]
        %v256 = vld [vmem:[%s1] sm:$0xf]
        %v257 = vld [vmem:[%s1 + $0x4] sm:$0xf]
        %v258 = vld [vmem:[%s1 + $0x8] sm:$0xf]
        %v259 = vld [vmem:[%s1 + $0xc] sm:$0xf]
        %v260 = vld [vmem:[%s1 + $0x10] sm:$0xf]
        %v261 = vld [vmem:[%s1 + $0x14] sm:$0xf]
        %v262 = vld [vmem:[%s1 + $0x18] sm:$0xf]
        %v263 = vld [vmem:[%s1 + $0x1c] sm:$0xf]
        %v264 = vld [vmem:[%s1 + $0x20] sm:$0xf]
        %v265 = vld [vmem:[%s1 + $0x24] sm:$0xf]
        %v266 = vld [vmem:[%s1 + $0x28] sm:$0xf]
        %v267 = vld [vmem:[%s1 + $0x2c] sm:$0xf]
        %v268 = vld [vmem:[%s1 + $0x30] sm:$0xf]
        %v269 = vld [vmem:[%s1 + $0x34] sm:$0xf]
        %v270 = vld [vmem:[%s1 + $0x38] sm:$0xf]
        %v271 = vld [vmem:[%s1 + $0x3c] sm:$0xf]
        %v272 = vld [vmem:[%s1 + $0x40] sm:$0xf]
        %v273 = vld [vmem:[%s1 + $0x44] sm:$0xf]
        %v274 = vld [vmem:[%s1 + $0x48] sm:$0xf]
        %v275 = vld [vmem:[%s1 + $0x4c] sm:$0xf]
        %v276 = vld [vmem:[%s1 + $0x50] sm:$0xf]
        %v277 = vld [vmem:[%s1 + $0x54] sm:$0xf]
        %v278 = vld [vmem:[%s1 + $0x58] sm:$0xf]
        %v279 = vld [vmem:[%s1 + $0x5c] sm:$0xf]
        %v280 = vld [vmem:[%s1 + $0x60] sm:$0xf]
        %v281 = vld [vmem:[%s1 + $0x64] sm:$0xf]
        %v282 = vld [vmem:[%s1 + $0x68] sm:$0xf]
        %v283 = vld [vmem:[%s1 + $0x6c] sm:$0xf]
        %v284 = vld [vmem:[%s1 + $0x70] sm:$0xf]
        %v285 = vld [vmem:[%s1 + $0x74] sm:$0xf]
        %v286 = vld [vmem:[%s1 + $0x78] sm:$0xf]
        %v287 = vld [vmem:[%s1 + $0x7c] sm:$0xf]
        %v288 = vld [vmem:[%s1 + $0x80] sm:$0xf]
        %v289 = vld [vmem:[%s1 + $0x84] sm:$0xf]
        %v290 = vld [vmem:[%s1 + $0x88] sm:$0xf]
        %v291 = vld [vmem:[%s1 + $0x8c] sm:$0xf]
        %v292 = vld [vmem:[%s1 + $0x90] sm:$0xf]
        %v293 = vld [vmem:[%s1 + $0x94] sm:$0xf]
        %v294 = vld [vmem:[%s1 + $0x98] sm:$0xf]
        %v295 = vld [vmem:[%s1 + $0x9c] sm:$0xf]
        %v296 = vld [vmem:[%s1 + $0xa0] sm:$0xf]
        %v297 = vld [vmem:[%s1 + $0xa4] sm:$0xf]
        %v298 = vld [vmem:[%s1 + $0xa8] sm:$0xf]
        %v299 = vld [vmem:[%s1 + $0xac] sm:$0xf]
        %v300 = vld [vmem:[%s1 + $0xb0] sm:$0xf]
        %v301 = vld [vmem:[%s1 + $0xb4] sm:$0xf]
        %v302 = vld [vmem:[%s1 + $0xb8] sm:$0xf]
        %v303 = vld [vmem:[%s1 + $0xbc] sm:$0xf]
        %v304 = vld [vmem:[%s1 + $0xc0] sm:$0xf]
        %v305 = vld [vmem:[%s1 + $0xc4] sm:$0xf]
        %v306 = vld [vmem:[%s1 + $0xc8] sm:$0xf]
        %v307 = vld [vmem:[%s1 + $0xcc] sm:$0xf]
        %v308 = vld [vmem:[%s1 + $0xd0] sm:$0xf]
        %v309 = vld [vmem:[%s1 + $0xd4] sm:$0xf]
        %v310 = vld [vmem:[%s1 + $0xd8] sm:$0xf]
        %v311 = vld [vmem:[%s1 + $0xdc] sm:$0xf]
        %v312 = vld [vmem:[%s1 + $0xe0] sm:$0xf]
        %v313 = vld [vmem:[%s1 + $0xe4] sm:$0xf]
        %v314 = vld [vmem:[%s1 + $0xe8] sm:$0xf]
        %v315 = vld [vmem:[%s1 + $0xec] sm:$0xf]
        %v316 = vld [vmem:[%s1 + $0xf0] sm:$0xf]
        %v317 = vld [vmem:[%s1 + $0xf4] sm:$0xf]
        %v318 = vld [vmem:[%s1 + $0xf8] sm:$0xf]
        %v319 = vld [vmem:[%s1 + $0xfc] sm:$0xf]
        %v320 = vld [vmem:[%s2] sm:$0xff]
        %v321 = vld [vmem:[%s2 + $0x8] sm:$0xff]
        %v322 = vld [vmem:[%s2 + $0x10] sm:$0xff]
        %v323 = vld [vmem:[%s2 + $0x18] sm:$0xff]
        %v324 = vld [vmem:[%s2 + $0x20] sm:$0xff]
        %v325 = vld [vmem:[%s2 + $0x28] sm:$0xff]
        %v326 = vld [vmem:[%s2 + $0x30] sm:$0xff]
        %v327 = vld [vmem:[%s2 + $0x38] sm:$0xff]
        %v328 = vld [vmem:[%s2 + $0x40] sm:$0xff]
        %v329 = vld [vmem:[%s2 + $0x48] sm:$0xff]
        %v330 = vld [vmem:[%s2 + $0x50] sm:$0xff]
        %v331 = vld [vmem:[%s2 + $0x58] sm:$0xff]
        %v332 = vld [vmem:[%s2 + $0x60] sm:$0xff]
        %v333 = vld [vmem:[%s2 + $0x68] sm:$0xff]
        %v334 = vld [vmem:[%s2 + $0x70] sm:$0xff]
        %v335 = vld [vmem:[%s2 + $0x78] sm:$0xff]
        %v336 = vld [vmem:[%s2 + $0x80] sm:$0xff]
        %v337 = vld [vmem:[%s2 + $0x88] sm:$0xff]
        %v338 = vld [vmem:[%s2 + $0x90] sm:$0xff]
        %v339 = vld [vmem:[%s2 + $0x98] sm:$0xff]
        %v340 = vld [vmem:[%s2 + $0xa0] sm:$0xff]
        %v341 = vld [vmem:[%s2 + $0xa8] sm:$0xff]
        %v342 = vld [vmem:[%s2 + $0xb0] sm:$0xff]
        %v343 = vld [vmem:[%s2 + $0xb8] sm:$0xff]
        %v344 = vld [vmem:[%s2 + $0xc0] sm:$0xff]
        %v345 = vld [vmem:[%s2 + $0xc8] sm:$0xff]
        %v346 = vld [vmem:[%s2 + $0xd0] sm:$0xff]
        %v347 = vld [vmem:[%s2 + $0xd8] sm:$0xff]
        %v348 = vld [vmem:[%s2 + $0xe0] sm:$0xff]
        %v349 = vld [vmem:[%s2 + $0xe8] sm:$0xff]
        %v350 = vld [vmem:[%s2 + $0xf0] sm:$0xff]
        %v351 = vld [vmem:[%s2 + $0xf8] sm:$0xff]
        %v352 = vld [vmem:[%s2 + $0x100] sm:$0xff]
        %v353 = vld [vmem:[%s2 + $0x108] sm:$0xff]
        %v354 = vld [vmem:[%s2 + $0x110] sm:$0xff]
        %v355 = vld [vmem:[%s2 + $0x118] sm:$0xff]
        %v356 = vld [vmem:[%s2 + $0x120] sm:$0xff]
        %v357 = vld [vmem:[%s2 + $0x128] sm:$0xff]
        %v358 = vld [vmem:[%s2 + $0x130] sm:$0xff]
        %v359 = vld [vmem:[%s2 + $0x138] sm:$0xff]
        %v360 = vld [vmem:[%s2 + $0x140] sm:$0xff]
        %v361 = vld [vmem:[%s2 + $0x148] sm:$0xff]
        %v362 = vld [vmem:[%s2 + $0x150] sm:$0xff]
        %v363 = vld [vmem:[%s2 + $0x158] sm:$0xff]
        %v364 = vld [vmem:[%s2 + $0x160] sm:$0xff]
        %v365 = vld [vmem:[%s2 + $0x168] sm:$0xff]
        %v366 = vld [vmem:[%s2 + $0x170] sm:$0xff]
        %v367 = vld [vmem:[%s2 + $0x178] sm:$0xff]
        %v368 = vld [vmem:[%s2 + $0x180] sm:$0xff]
        %v369 = vld [vmem:[%s2 + $0x188] sm:$0xff]
        %v370 = vld [vmem:[%s2 + $0x190] sm:$0xff]
        %v371 = vld [vmem:[%s2 + $0x198] sm:$0xff]
        %v372 = vld [vmem:[%s2 + $0x1a0] sm:$0xff]
        %v373 = vld [vmem:[%s2 + $0x1a8] sm:$0xff]
        %v374 = vld [vmem:[%s2 + $0x1b0] sm:$0xff]
        %v375 = vld [vmem:[%s2 + $0x1b8] sm:$0xff]
        %v376 = vld [vmem:[%s2 + $0x1c0] sm:$0xff]
        %v377 = vld [vmem:[%s2 + $0x1c8] sm:$0xff]
        %v378 = vld [vmem:[%s2 + $0x1d0] sm:$0xff]
        %v379 = vld [vmem:[%s2 + $0x1d8] sm:$0xff]
        %v380 = vld [vmem:[%s2 + $0x1e0] sm:$0xff]
        %v381 = vld [vmem:[%s2 + $0x1e8] sm:$0xff]
        %v382 = vld [vmem:[%s2 + $0x1f0] sm:$0xff]
        %v383 = vld [vmem:[%s2 + $0x1f8] sm:$0xff]
        %385 = vset.pattern.permute.xlu0 0
        %386 = vperm.xlu0 %385, %v320
        %v387 = vpop.permute.xlu0 %386
        %390 = vset.pattern.permute.xlu0 0
        %391 = vperm.xlu0 %390, %v321
        %v392 = vpop.permute.xlu0 %391
        %395 = vset.pattern.permute.xlu0 0
        %396 = vperm.xlu0 %395, %v322
        %v397 = vpop.permute.xlu0 %396
        %400 = vset.pattern.permute.xlu0 0
        %401 = vperm.xlu0 %400, %v323
        %v402 = vpop.permute.xlu0 %401
        %405 = vset.pattern.permute.xlu0 0
        %406 = vperm.xlu0 %405, %v324
        %v407 = vpop.permute.xlu0 %406
        %410 = vset.pattern.permute.xlu0 0
        %411 = vperm.xlu0 %410, %v325
        %v412 = vpop.permute.xlu0 %411
        %415 = vset.pattern.permute.xlu0 0
        %416 = vperm.xlu0 %415, %v326
        %v417 = vpop.permute.xlu0 %416
        %420 = vset.pattern.permute.xlu0 0
        %421 = vperm.xlu0 %420, %v327
        %v422 = vpop.permute.xlu0 %421
        %425 = vset.pattern.permute.xlu0 0
        %426 = vperm.xlu0 %425, %v328
        %v427 = vpop.permute.xlu0 %426
        %430 = vset.pattern.permute.xlu0 0
        %431 = vperm.xlu0 %430, %v329
        %v432 = vpop.permute.xlu0 %431
        %435 = vset.pattern.permute.xlu0 0
        %436 = vperm.xlu0 %435, %v330
        %v437 = vpop.permute.xlu0 %436
        %440 = vset.pattern.permute.xlu0 0
        %441 = vperm.xlu0 %440, %v331
        %v442 = vpop.permute.xlu0 %441
        %445 = vset.pattern.permute.xlu0 0
        %446 = vperm.xlu0 %445, %v332
        %v447 = vpop.permute.xlu0 %446
        %450 = vset.pattern.permute.xlu0 0
        %451 = vperm.xlu0 %450, %v333
        %v452 = vpop.permute.xlu0 %451
        %455 = vset.pattern.permute.xlu0 0
        %456 = vperm.xlu0 %455, %v334
        %v457 = vpop.permute.xlu0 %456
        %460 = vset.pattern.permute.xlu0 0
        %461 = vperm.xlu0 %460, %v335
        %v462 = vpop.permute.xlu0 %461
        %465 = vset.pattern.permute.xlu0 0
        %466 = vperm.xlu0 %465, %v336
        %v467 = vpop.permute.xlu0 %466
        %470 = vset.pattern.permute.xlu0 0
        %471 = vperm.xlu0 %470, %v337
        %v472 = vpop.permute.xlu0 %471
        %475 = vset.pattern.permute.xlu0 0
        %476 = vperm.xlu0 %475, %v338
        %v477 = vpop.permute.xlu0 %476
        %480 = vset.pattern.permute.xlu0 0
        %481 = vperm.xlu0 %480, %v339
        %v482 = vpop.permute.xlu0 %481
        %485 = vset.pattern.permute.xlu0 0
        %486 = vperm.xlu0 %485, %v340
        %v487 = vpop.permute.xlu0 %486
        %490 = vset.pattern.permute.xlu0 0
        %491 = vperm.xlu0 %490, %v341
        %v492 = vpop.permute.xlu0 %491
        %495 = vset.pattern.permute.xlu0 0
        %496 = vperm.xlu0 %495, %v342
        %v497 = vpop.permute.xlu0 %496
        %500 = vset.pattern.permute.xlu0 0
        %501 = vperm.xlu0 %500, %v343
        %v502 = vpop.permute.xlu0 %501
        %505 = vset.pattern.permute.xlu0 0
        %506 = vperm.xlu0 %505, %v344
        %v507 = vpop.permute.xlu0 %506
        %510 = vset.pattern.permute.xlu0 0
        %511 = vperm.xlu0 %510, %v345
        %v512 = vpop.permute.xlu0 %511
        %515 = vset.pattern.permute.xlu0 0
        %516 = vperm.xlu0 %515, %v346
        %v517 = vpop.permute.xlu0 %516
        %520 = vset.pattern.permute.xlu0 0
        %521 = vperm.xlu0 %520, %v347
        %v522 = vpop.permute.xlu0 %521
        %525 = vset.pattern.permute.xlu0 0
        %526 = vperm.xlu0 %525, %v348
        %v527 = vpop.permute.xlu0 %526
        %530 = vset.pattern.permute.xlu0 0
        %531 = vperm.xlu0 %530, %v349
        %v532 = vpop.permute.xlu0 %531
        %535 = vset.pattern.permute.xlu0 0
        %536 = vperm.xlu0 %535, %v350
        %v537 = vpop.permute.xlu0 %536
        %540 = vset.pattern.permute.xlu0 0
        %541 = vperm.xlu0 %540, %v351
        %v542 = vpop.permute.xlu0 %541
        %545 = vset.pattern.permute.xlu0 0
        %546 = vperm.xlu0 %545, %v352
        %v547 = vpop.permute.xlu0 %546
        %550 = vset.pattern.permute.xlu0 0
        %551 = vperm.xlu0 %550, %v353
        %v552 = vpop.permute.xlu0 %551
        %555 = vset.pattern.permute.xlu0 0
        %556 = vperm.xlu0 %555, %v354
        %v557 = vpop.permute.xlu0 %556
        %560 = vset.pattern.permute.xlu0 0
        %561 = vperm.xlu0 %560, %v355
        %v562 = vpop.permute.xlu0 %561
        %565 = vset.pattern.permute.xlu0 0
        %566 = vperm.xlu0 %565, %v356
        %v567 = vpop.permute.xlu0 %566
        %570 = vset.pattern.permute.xlu0 0
        %571 = vperm.xlu0 %570, %v357
        %v572 = vpop.permute.xlu0 %571
        %575 = vset.pattern.permute.xlu0 0
        %576 = vperm.xlu0 %575, %v358
        %v577 = vpop.permute.xlu0 %576
        %580 = vset.pattern.permute.xlu0 0
        %581 = vperm.xlu0 %580, %v359
        %v582 = vpop.permute.xlu0 %581
        %585 = vset.pattern.permute.xlu0 0
        %586 = vperm.xlu0 %585, %v360
        %v587 = vpop.permute.xlu0 %586
        %590 = vset.pattern.permute.xlu0 0
        %591 = vperm.xlu0 %590, %v361
        %v592 = vpop.permute.xlu0 %591
        %595 = vset.pattern.permute.xlu0 0
        %596 = vperm.xlu0 %595, %v362
        %v597 = vpop.permute.xlu0 %596
        %600 = vset.pattern.permute.xlu0 0
        %601 = vperm.xlu0 %600, %v363
        %v602 = vpop.permute.xlu0 %601
        %605 = vset.pattern.permute.xlu0 0
        %606 = vperm.xlu0 %605, %v364
        %v607 = vpop.permute.xlu0 %606
        %610 = vset.pattern.permute.xlu0 0
        %611 = vperm.xlu0 %610, %v365
        %v612 = vpop.permute.xlu0 %611
        %615 = vset.pattern.permute.xlu0 0
        %616 = vperm.xlu0 %615, %v366
        %v617 = vpop.permute.xlu0 %616
        %620 = vset.pattern.permute.xlu0 0
        %621 = vperm.xlu0 %620, %v367
        %v622 = vpop.permute.xlu0 %621
        %625 = vset.pattern.permute.xlu0 0
        %626 = vperm.xlu0 %625, %v368
        %v627 = vpop.permute.xlu0 %626
        %630 = vset.pattern.permute.xlu0 0
        %631 = vperm.xlu0 %630, %v369
        %v632 = vpop.permute.xlu0 %631
        %635 = vset.pattern.permute.xlu0 0
        %636 = vperm.xlu0 %635, %v370
        %v637 = vpop.permute.xlu0 %636
        %640 = vset.pattern.permute.xlu0 0
        %641 = vperm.xlu0 %640, %v371
        %v642 = vpop.permute.xlu0 %641
        %645 = vset.pattern.permute.xlu0 0
        %646 = vperm.xlu0 %645, %v372
        %v647 = vpop.permute.xlu0 %646
        %650 = vset.pattern.permute.xlu0 0
        %651 = vperm.xlu0 %650, %v373
        %v652 = vpop.permute.xlu0 %651
        %655 = vset.pattern.permute.xlu0 0
        %656 = vperm.xlu0 %655, %v374
        %v657 = vpop.permute.xlu0 %656
        %660 = vset.pattern.permute.xlu0 0
        %661 = vperm.xlu0 %660, %v375
        %v662 = vpop.permute.xlu0 %661
        %665 = vset.pattern.permute.xlu0 0
        %666 = vperm.xlu0 %665, %v376
        %v667 = vpop.permute.xlu0 %666
        %670 = vset.pattern.permute.xlu0 0
        %671 = vperm.xlu0 %670, %v377
        %v672 = vpop.permute.xlu0 %671
        %675 = vset.pattern.permute.xlu0 0
        %676 = vperm.xlu0 %675, %v378
        %v677 = vpop.permute.xlu0 %676
        %680 = vset.pattern.permute.xlu0 0
        %681 = vperm.xlu0 %680, %v379
        %v682 = vpop.permute.xlu0 %681
        %685 = vset.pattern.permute.xlu0 0
        %686 = vperm.xlu0 %685, %v380
        %v687 = vpop.permute.xlu0 %686
        %690 = vset.pattern.permute.xlu0 0
        %691 = vperm.xlu0 %690, %v381
        %v692 = vpop.permute.xlu0 %691
        %695 = vset.pattern.permute.xlu0 0
        %696 = vperm.xlu0 %695, %v382
        %v697 = vpop.permute.xlu0 %696
        %700 = vset.pattern.permute.xlu0 0
        %701 = vperm.xlu0 %700, %v383
        %v702 = vpop.permute.xlu0 %701
        %v768 = vunpack.c.l.b16 %v256
        %v769 = vunpack.c.l.b16 %v257
        %v770 = vunpack.c.l.b16 %v258
        %v771 = vunpack.c.l.b16 %v259
        %v772 = vunpack.c.l.b16 %v260
        %v773 = vunpack.c.l.b16 %v261
        %v774 = vunpack.c.l.b16 %v262
        %v775 = vunpack.c.l.b16 %v263
        %v776 = vunpack.c.l.b16 %v264
        %v777 = vunpack.c.l.b16 %v265
        %v778 = vunpack.c.l.b16 %v266
        %v779 = vunpack.c.l.b16 %v267
        %v780 = vunpack.c.l.b16 %v268
        %v781 = vunpack.c.l.b16 %v269
        %v782 = vunpack.c.l.b16 %v270
        %v783 = vunpack.c.l.b16 %v271
        %v784 = vunpack.c.l.b16 %v272
        %v785 = vunpack.c.l.b16 %v273
        %v786 = vunpack.c.l.b16 %v274
        %v787 = vunpack.c.l.b16 %v275
        %v788 = vunpack.c.l.b16 %v276
        %v789 = vunpack.c.l.b16 %v277
        %v790 = vunpack.c.l.b16 %v278
        %v791 = vunpack.c.l.b16 %v279
        %v792 = vunpack.c.l.b16 %v280
        %v793 = vunpack.c.l.b16 %v281
        %v794 = vunpack.c.l.b16 %v282
        %v795 = vunpack.c.l.b16 %v283
        %v796 = vunpack.c.l.b16 %v284
        %v797 = vunpack.c.l.b16 %v285
        %v798 = vunpack.c.l.b16 %v286
        %v799 = vunpack.c.l.b16 %v287
        %v800 = vunpack.c.l.b16 %v288
        %v801 = vunpack.c.l.b16 %v289
        %v802 = vunpack.c.l.b16 %v290
        %v803 = vunpack.c.l.b16 %v291
        %v804 = vunpack.c.l.b16 %v292
        %v805 = vunpack.c.l.b16 %v293
        %v806 = vunpack.c.l.b16 %v294
        %v807 = vunpack.c.l.b16 %v295
        %v808 = vunpack.c.l.b16 %v296
        %v809 = vunpack.c.l.b16 %v297
        %v810 = vunpack.c.l.b16 %v298
        %v811 = vunpack.c.l.b16 %v299
        %v812 = vunpack.c.l.b16 %v300
        %v813 = vunpack.c.l.b16 %v301
        %v814 = vunpack.c.l.b16 %v302
        %v815 = vunpack.c.l.b16 %v303
        %v816 = vunpack.c.l.b16 %v304
        %v817 = vunpack.c.l.b16 %v305
        %v818 = vunpack.c.l.b16 %v306
        %v819 = vunpack.c.l.b16 %v307
        %v820 = vunpack.c.l.b16 %v308
        %v821 = vunpack.c.l.b16 %v309
        %v822 = vunpack.c.l.b16 %v310
        %v823 = vunpack.c.l.b16 %v311
        %v824 = vunpack.c.l.b16 %v312
        %v825 = vunpack.c.l.b16 %v313
        %v826 = vunpack.c.l.b16 %v314
        %v827 = vunpack.c.l.b16 %v315
        %v828 = vunpack.c.l.b16 %v316
        %v829 = vunpack.c.l.b16 %v317
        %v830 = vunpack.c.l.b16 %v318
        %v831 = vunpack.c.l.b16 %v319
        %v832 = vpack.c.b16 %v769, %v768
        %v833 = vpack.c.b16 %v771, %v770
        %v834 = vpack.c.b16 %v773, %v772
        %v835 = vpack.c.b16 %v775, %v774
        %v836 = vpack.c.b16 %v777, %v776
        %v837 = vpack.c.b16 %v779, %v778
        %v838 = vpack.c.b16 %v781, %v780
        %v839 = vpack.c.b16 %v783, %v782
        %v840 = vpack.c.b16 %v785, %v784
        %v841 = vpack.c.b16 %v787, %v786
        %v842 = vpack.c.b16 %v789, %v788
        %v843 = vpack.c.b16 %v791, %v790
        %v844 = vpack.c.b16 %v793, %v792
        %v845 = vpack.c.b16 %v795, %v794
        %v846 = vpack.c.b16 %v797, %v796
        %v847 = vpack.c.b16 %v799, %v798
        %v848 = vpack.c.b16 %v801, %v800
        %v849 = vpack.c.b16 %v803, %v802
        %v850 = vpack.c.b16 %v805, %v804
        %v851 = vpack.c.b16 %v807, %v806
        %v852 = vpack.c.b16 %v809, %v808
        %v853 = vpack.c.b16 %v811, %v810
        %v854 = vpack.c.b16 %v813, %v812
        %v855 = vpack.c.b16 %v815, %v814
        %v856 = vpack.c.b16 %v817, %v816
        %v857 = vpack.c.b16 %v819, %v818
        %v858 = vpack.c.b16 %v821, %v820
        %v859 = vpack.c.b16 %v823, %v822
        %v860 = vpack.c.b16 %v825, %v824
        %v861 = vpack.c.b16 %v827, %v826
        %v862 = vpack.c.b16 %v829, %v828
        %v863 = vpack.c.b16 %v831, %v830
        %v866 = vunpack.c.l.s4 1983009808
        %v867 = vunpack.c.0.s8 %v866
        %v868 = vlaneseq
        %v869 = vshrl.u32 %v868, 7
        %v870 = vsub.s32 %v867, %v869
        %v871 = vrot.slane %v255, %v870
        %v872 = vcombine.high %v871, %v871
        %vm873 = vcmask 31744
        %v875 = vsel %vm873, %v832, 0
        %v878 = vsel %vm873, %v833, 0
        %v881 = vsel %vm873, %v834, 0
        %v884 = vsel %vm873, %v835, 0
        %v887 = vsel %vm873, %v836, 0
        %v890 = vsel %vm873, %v837, 0
        %v893 = vsel %vm873, %v838, 0
        %v896 = vsel %vm873, %v839, 0
        %v899 = vsel %vm873, %v840, 0
        %v902 = vsel %vm873, %v841, 0
        %v905 = vsel %vm873, %v842, 0
        %v908 = vsel %vm873, %v843, 0
        %v911 = vsel %vm873, %v844, 0
        %v914 = vsel %vm873, %v845, 0
        %v917 = vsel %vm873, %v846, 0
        %v920 = vsel %vm873, %v847, 0
        %v923 = vsel %vm873, %v848, 0
        %v926 = vsel %vm873, %v849, 0
        %v929 = vsel %vm873, %v850, 0
        %v932 = vsel %vm873, %v851, 0
        %v935 = vsel %vm873, %v852, 0
        %v938 = vsel %vm873, %v853, 0
        %v941 = vsel %vm873, %v854, 0
        %v944 = vsel %vm873, %v855, 0
        %v947 = vsel %vm873, %v856, 0
        %v950 = vsel %vm873, %v857, 0
        %v953 = vsel %vm873, %v858, 0
        %v956 = vsel %vm873, %v859, 0
        %v959 = vsel %vm873, %v860, 0
        %v962 = vsel %vm873, %v861, 0
        %v965 = vsel %vm873, %v862, 0
        %v968 = vsel %vm873, %v863, 0
        %vm970 = vcmask 1041408
        %v972 = vsel %vm970, %v871, 0
        %v975 = vsel %vm970, %v872, 0
        %977 = vmatprep.subr.bf16.mxu0 0
        %978 = vmatpush1.bf16.msra.mxu0 0
        %979 = vmatprep.subr.bf16.mxu0 0
        %980 = vmatpush1.bf16.msra.mxu0 0
        %981 = vmatprep.subr.bf16.mxu0 0
        %982 = vmatpush1.bf16.msra.mxu0 0
        %983 = vmatprep.subr.bf16.mxu0 0
        %984 = vmatpush1.bf16.msra.mxu0 0
        %985 = vmatprep.subr.bf16.mxu0 0
        %986 = vmatpush1.bf16.msra.mxu0 0
        %987 = vmatprep.subr.bf16.mxu0 0
        %988 = vmatpush1.bf16.msra.mxu0 0
        %989 = vmatprep.subr.bf16.mxu0 0
        %990 = vmatpush1.bf16.msra.mxu0 0
        %991 = vmatprep.subr.bf16.mxu0 %v975
        %992 = vmatpush1.bf16.msra.mxu0 %v972
        %993 = vmatprep.subr.bf16.mxu0 0
        %994 = vmatpush2.bf16.msra.mxu0 0
        %995 = vmatprep.subr.bf16.mxu0 0
        %996 = vmatpush2.bf16.msra.mxu0 0
        %997 = vmatprep.subr.bf16.mxu0 0
        %998 = vmatpush2.bf16.msra.mxu0 0
        %999 = vmatprep.subr.bf16.mxu0 0
        %1000 = vmatpush2.bf16.msra.mxu0 0
        %1001 = vmatprep.subr.bf16.mxu0 0
        %1002 = vmatpush2.bf16.msra.mxu0 0
        %1003 = vmatprep.subr.bf16.mxu0 0
        %1004 = vmatpush2.bf16.msra.mxu0 0
        %1005 = vmatprep.subr.bf16.mxu0 0
        %1006 = vmatpush2.bf16.msra.mxu0 0
        %1007 = vmatprep.subr.bf16.mxu0 0
        %1008 = vmatpush2.bf16.msra.mxu0 0
        %1009 = vmatprep.mubr.bf16.mxu0 0
        %1010 = vmatmul.mubr.bf16.gmra.mxu0 %v875
        %v1011 = vpop.f32.mrf.mxu0
        %v1012 = vadd.f32 %v387, %v1011
        %v1013 = vpop.f32.mrf.mxu0
        %v1014 = vadd.f32 %v387, %v1013
        %v1015 = vpop.f32.mrf.mxu0
        %v1016 = vadd.f32 %v392, %v1015
        %v1017 = vpop.f32.mrf.mxu0
        %v1018 = vadd.f32 %v392, %v1017
        %1019 = vmatprep.mubr.bf16.mxu0 0
        %1020 = vmatmul.mubr.bf16.gmra.mxu0 %v878
        %v1021 = vpop.f32.mrf.mxu0
        %v1022 = vadd.f32 %v397, %v1021
        %v1023 = vpop.f32.mrf.mxu0
        %v1024 = vadd.f32 %v397, %v1023
        %v1025 = vpop.f32.mrf.mxu0
        %v1026 = vadd.f32 %v402, %v1025
        %v1027 = vpop.f32.mrf.mxu0
        %v1028 = vadd.f32 %v402, %v1027
        %1029 = vmatprep.mubr.bf16.mxu0 0
        %1030 = vmatmul.mubr.bf16.gmra.mxu0 %v881
        %v1031 = vpop.f32.mrf.mxu0
        %v1032 = vadd.f32 %v407, %v1031
        %v1033 = vpop.f32.mrf.mxu0
        %v1034 = vadd.f32 %v407, %v1033
        %v1035 = vpop.f32.mrf.mxu0
        %v1036 = vadd.f32 %v412, %v1035
        %v1037 = vpop.f32.mrf.mxu0
        %v1038 = vadd.f32 %v412, %v1037
        %1039 = vmatprep.mubr.bf16.mxu0 0
        %1040 = vmatmul.mubr.bf16.gmra.mxu0 %v884
        %v1041 = vpop.f32.mrf.mxu0
        %v1042 = vadd.f32 %v417, %v1041
        %v1043 = vpop.f32.mrf.mxu0
        %v1044 = vadd.f32 %v417, %v1043
        %v1045 = vpop.f32.mrf.mxu0
        %v1046 = vadd.f32 %v422, %v1045
        %v1047 = vpop.f32.mrf.mxu0
        %v1048 = vadd.f32 %v422, %v1047
        %1049 = vmatprep.mubr.bf16.mxu0 0
        %1050 = vmatmul.mubr.bf16.gmra.mxu0 %v887
        %v1051 = vpop.f32.mrf.mxu0
        %v1052 = vadd.f32 %v427, %v1051
        %v1053 = vpop.f32.mrf.mxu0
        %v1054 = vadd.f32 %v427, %v1053
        %v1055 = vpop.f32.mrf.mxu0
        %v1056 = vadd.f32 %v432, %v1055
        %v1057 = vpop.f32.mrf.mxu0
        %v1058 = vadd.f32 %v432, %v1057
        %1059 = vmatprep.mubr.bf16.mxu0 0
        %1060 = vmatmul.mubr.bf16.gmra.mxu0 %v890
        %v1061 = vpop.f32.mrf.mxu0
        %v1062 = vadd.f32 %v437, %v1061
        %v1063 = vpop.f32.mrf.mxu0
        %v1064 = vadd.f32 %v437, %v1063
        %v1065 = vpop.f32.mrf.mxu0
        %v1066 = vadd.f32 %v442, %v1065
        %v1067 = vpop.f32.mrf.mxu0
        %v1068 = vadd.f32 %v442, %v1067
        %1069 = vmatprep.mubr.bf16.mxu0 0
        %1070 = vmatmul.mubr.bf16.gmra.mxu0 %v893
        %v1071 = vpop.f32.mrf.mxu0
        %v1072 = vadd.f32 %v447, %v1071
        %v1073 = vpop.f32.mrf.mxu0
        %v1074 = vadd.f32 %v447, %v1073
        %v1075 = vpop.f32.mrf.mxu0
        %v1076 = vadd.f32 %v452, %v1075
        %v1077 = vpop.f32.mrf.mxu0
        %v1078 = vadd.f32 %v452, %v1077
        %1079 = vmatprep.mubr.bf16.mxu0 0
        %1080 = vmatmul.mubr.bf16.gmra.mxu0 %v896
        %v1081 = vpop.f32.mrf.mxu0
        %v1082 = vadd.f32 %v457, %v1081
        %v1083 = vpop.f32.mrf.mxu0
        %v1084 = vadd.f32 %v457, %v1083
        %v1085 = vpop.f32.mrf.mxu0
        %v1086 = vadd.f32 %v462, %v1085
        %v1087 = vpop.f32.mrf.mxu0
        %v1088 = vadd.f32 %v462, %v1087
        %1089 = vmatprep.mubr.bf16.mxu0 0
        %1090 = vmatmul.mubr.bf16.gmra.mxu0 %v899
        %v1091 = vpop.f32.mrf.mxu0
        %v1092 = vadd.f32 %v467, %v1091
        %v1093 = vpop.f32.mrf.mxu0
        %v1094 = vadd.f32 %v467, %v1093
        %v1095 = vpop.f32.mrf.mxu0
        %v1096 = vadd.f32 %v472, %v1095
        %v1097 = vpop.f32.mrf.mxu0
        %v1098 = vadd.f32 %v472, %v1097
        %1099 = vmatprep.mubr.bf16.mxu0 0
        %1100 = vmatmul.mubr.bf16.gmra.mxu0 %v902
        %v1101 = vpop.f32.mrf.mxu0
        %v1102 = vadd.f32 %v477, %v1101
        %v1103 = vpop.f32.mrf.mxu0
        %v1104 = vadd.f32 %v477, %v1103
        %v1105 = vpop.f32.mrf.mxu0
        %v1106 = vadd.f32 %v482, %v1105
        %v1107 = vpop.f32.mrf.mxu0
        %v1108 = vadd.f32 %v482, %v1107
        %1109 = vmatprep.mubr.bf16.mxu0 0
        %1110 = vmatmul.mubr.bf16.gmra.mxu0 %v905
        %v1111 = vpop.f32.mrf.mxu0
        %v1112 = vadd.f32 %v487, %v1111
        %v1113 = vpop.f32.mrf.mxu0
        %v1114 = vadd.f32 %v487, %v1113
        %v1115 = vpop.f32.mrf.mxu0
        %v1116 = vadd.f32 %v492, %v1115
        %v1117 = vpop.f32.mrf.mxu0
        %v1118 = vadd.f32 %v492, %v1117
        %1119 = vmatprep.mubr.bf16.mxu0 0
        %1120 = vmatmul.mubr.bf16.gmra.mxu0 %v908
        %v1121 = vpop.f32.mrf.mxu0
        %v1122 = vadd.f32 %v497, %v1121
        %v1123 = vpop.f32.mrf.mxu0
        %v1124 = vadd.f32 %v497, %v1123
        %v1125 = vpop.f32.mrf.mxu0
        %v1126 = vadd.f32 %v502, %v1125
        %v1127 = vpop.f32.mrf.mxu0
        %v1128 = vadd.f32 %v502, %v1127
        %1129 = vmatprep.mubr.bf16.mxu0 0
        %1130 = vmatmul.mubr.bf16.gmra.mxu0 %v911
        %v1131 = vpop.f32.mrf.mxu0
        %v1132 = vadd.f32 %v507, %v1131
        %v1133 = vpop.f32.mrf.mxu0
        %v1134 = vadd.f32 %v507, %v1133
        %v1135 = vpop.f32.mrf.mxu0
        %v1136 = vadd.f32 %v512, %v1135
        %v1137 = vpop.f32.mrf.mxu0
        %v1138 = vadd.f32 %v512, %v1137
        %1139 = vmatprep.mubr.bf16.mxu0 0
        %1140 = vmatmul.mubr.bf16.gmra.mxu0 %v914
        %v1141 = vpop.f32.mrf.mxu0
        %v1142 = vadd.f32 %v517, %v1141
        %v1143 = vpop.f32.mrf.mxu0
        %v1144 = vadd.f32 %v517, %v1143
        %v1145 = vpop.f32.mrf.mxu0
        %v1146 = vadd.f32 %v522, %v1145
        %v1147 = vpop.f32.mrf.mxu0
        %v1148 = vadd.f32 %v522, %v1147
        %1149 = vmatprep.mubr.bf16.mxu0 0
        %1150 = vmatmul.mubr.bf16.gmra.mxu0 %v917
        %v1151 = vpop.f32.mrf.mxu0
        %v1152 = vadd.f32 %v527, %v1151
        %v1153 = vpop.f32.mrf.mxu0
        %v1154 = vadd.f32 %v527, %v1153
        %v1155 = vpop.f32.mrf.mxu0
        %v1156 = vadd.f32 %v532, %v1155
        %v1157 = vpop.f32.mrf.mxu0
        %v1158 = vadd.f32 %v532, %v1157
        %1159 = vmatprep.mubr.bf16.mxu0 0
        %1160 = vmatmul.mubr.bf16.gmra.mxu0 %v920
        %v1161 = vpop.f32.mrf.mxu0
        %v1162 = vadd.f32 %v537, %v1161
        %v1163 = vpop.f32.mrf.mxu0
        %v1164 = vadd.f32 %v537, %v1163
        %v1165 = vpop.f32.mrf.mxu0
        %v1166 = vadd.f32 %v542, %v1165
        %v1167 = vpop.f32.mrf.mxu0
        %v1168 = vadd.f32 %v542, %v1167
        %1169 = vmatprep.mubr.bf16.mxu0 0
        %1170 = vmatmul.mubr.bf16.gmra.mxu0 %v923
        %v1171 = vpop.f32.mrf.mxu0
        %v1172 = vadd.f32 %v547, %v1171
        %v1173 = vpop.f32.mrf.mxu0
        %v1174 = vadd.f32 %v547, %v1173
        %v1175 = vpop.f32.mrf.mxu0
        %v1176 = vadd.f32 %v552, %v1175
        %v1177 = vpop.f32.mrf.mxu0
        %v1178 = vadd.f32 %v552, %v1177
        %1179 = vmatprep.mubr.bf16.mxu0 0
        %1180 = vmatmul.mubr.bf16.gmra.mxu0 %v926
        %v1181 = vpop.f32.mrf.mxu0
        %v1182 = vadd.f32 %v557, %v1181
        %v1183 = vpop.f32.mrf.mxu0
        %v1184 = vadd.f32 %v557, %v1183
        %v1185 = vpop.f32.mrf.mxu0
        %v1186 = vadd.f32 %v562, %v1185
        %v1187 = vpop.f32.mrf.mxu0
        %v1188 = vadd.f32 %v562, %v1187
        %1189 = vmatprep.mubr.bf16.mxu0 0
        %1190 = vmatmul.mubr.bf16.gmra.mxu0 %v929
        %v1191 = vpop.f32.mrf.mxu0
        %v1192 = vadd.f32 %v567, %v1191
        %v1193 = vpop.f32.mrf.mxu0
        %v1194 = vadd.f32 %v567, %v1193
        %v1195 = vpop.f32.mrf.mxu0
        %v1196 = vadd.f32 %v572, %v1195
        %v1197 = vpop.f32.mrf.mxu0
        %v1198 = vadd.f32 %v572, %v1197
        %1199 = vmatprep.mubr.bf16.mxu0 0
        %1200 = vmatmul.mubr.bf16.gmra.mxu0 %v932
        %v1201 = vpop.f32.mrf.mxu0
        %v1202 = vadd.f32 %v577, %v1201
        %v1203 = vpop.f32.mrf.mxu0
        %v1204 = vadd.f32 %v577, %v1203
        %v1205 = vpop.f32.mrf.mxu0
        %v1206 = vadd.f32 %v582, %v1205
        %v1207 = vpop.f32.mrf.mxu0
        %v1208 = vadd.f32 %v582, %v1207
        %1209 = vmatprep.mubr.bf16.mxu0 0
        %1210 = vmatmul.mubr.bf16.gmra.mxu0 %v935
        %v1211 = vpop.f32.mrf.mxu0
        %v1212 = vadd.f32 %v587, %v1211
        %v1213 = vpop.f32.mrf.mxu0
        %v1214 = vadd.f32 %v587, %v1213
        %v1215 = vpop.f32.mrf.mxu0
        %v1216 = vadd.f32 %v592, %v1215
        %v1217 = vpop.f32.mrf.mxu0
        %v1218 = vadd.f32 %v592, %v1217
        %1219 = vmatprep.mubr.bf16.mxu0 0
        %1220 = vmatmul.mubr.bf16.gmra.mxu0 %v938
        %v1221 = vpop.f32.mrf.mxu0
        %v1222 = vadd.f32 %v597, %v1221
        %v1223 = vpop.f32.mrf.mxu0
        %v1224 = vadd.f32 %v597, %v1223
        %v1225 = vpop.f32.mrf.mxu0
        %v1226 = vadd.f32 %v602, %v1225
        %v1227 = vpop.f32.mrf.mxu0
        %v1228 = vadd.f32 %v602, %v1227
        %1229 = vmatprep.mubr.bf16.mxu0 0
        %1230 = vmatmul.mubr.bf16.gmra.mxu0 %v941
        %v1231 = vpop.f32.mrf.mxu0
        %v1232 = vadd.f32 %v607, %v1231
        %v1233 = vpop.f32.mrf.mxu0
        %v1234 = vadd.f32 %v607, %v1233
        %v1235 = vpop.f32.mrf.mxu0
        %v1236 = vadd.f32 %v612, %v1235
        %v1237 = vpop.f32.mrf.mxu0
        %v1238 = vadd.f32 %v612, %v1237
        %1239 = vmatprep.mubr.bf16.mxu0 0
        %1240 = vmatmul.mubr.bf16.gmra.mxu0 %v944
        %v1241 = vpop.f32.mrf.mxu0
        %v1242 = vadd.f32 %v617, %v1241
        %v1243 = vpop.f32.mrf.mxu0
        %v1244 = vadd.f32 %v617, %v1243
        %v1245 = vpop.f32.mrf.mxu0
        %v1246 = vadd.f32 %v622, %v1245
        %v1247 = vpop.f32.mrf.mxu0
        %v1248 = vadd.f32 %v622, %v1247
        %1249 = vmatprep.mubr.bf16.mxu0 0
        %1250 = vmatmul.mubr.bf16.gmra.mxu0 %v947
        %v1251 = vpop.f32.mrf.mxu0
        %v1252 = vadd.f32 %v627, %v1251
        %v1253 = vpop.f32.mrf.mxu0
        %v1254 = vadd.f32 %v627, %v1253
        %v1255 = vpop.f32.mrf.mxu0
        %v1256 = vadd.f32 %v632, %v1255
        %v1257 = vpop.f32.mrf.mxu0
        %v1258 = vadd.f32 %v632, %v1257
        %1259 = vmatprep.mubr.bf16.mxu0 0
        %1260 = vmatmul.mubr.bf16.gmra.mxu0 %v950
        %v1261 = vpop.f32.mrf.mxu0
        %v1262 = vadd.f32 %v637, %v1261
        %v1263 = vpop.f32.mrf.mxu0
        %v1264 = vadd.f32 %v637, %v1263
        %v1265 = vpop.f32.mrf.mxu0
        %v1266 = vadd.f32 %v642, %v1265
        %v1267 = vpop.f32.mrf.mxu0
        %v1268 = vadd.f32 %v642, %v1267
        %1269 = vmatprep.mubr.bf16.mxu0 0
        %1270 = vmatmul.mubr.bf16.gmra.mxu0 %v953
        %v1271 = vpop.f32.mrf.mxu0
        %v1272 = vadd.f32 %v647, %v1271
        %v1273 = vpop.f32.mrf.mxu0
        %v1274 = vadd.f32 %v647, %v1273
        %v1275 = vpop.f32.mrf.mxu0
        %v1276 = vadd.f32 %v652, %v1275
        %v1277 = vpop.f32.mrf.mxu0
        %v1278 = vadd.f32 %v652, %v1277
        %1279 = vmatprep.mubr.bf16.mxu0 0
        %1280 = vmatmul.mubr.bf16.gmra.mxu0 %v956
        %v1281 = vpop.f32.mrf.mxu0
        %v1282 = vadd.f32 %v657, %v1281
        %v1283 = vpop.f32.mrf.mxu0
        %v1284 = vadd.f32 %v657, %v1283
        %v1285 = vpop.f32.mrf.mxu0
        %v1286 = vadd.f32 %v662, %v1285
        %v1287 = vpop.f32.mrf.mxu0
        %v1288 = vadd.f32 %v662, %v1287
        %1289 = vmatprep.mubr.bf16.mxu0 0
        %1290 = vmatmul.mubr.bf16.gmra.mxu0 %v959
        %v1291 = vpop.f32.mrf.mxu0
        %v1292 = vadd.f32 %v667, %v1291
        %v1293 = vpop.f32.mrf.mxu0
        %v1294 = vadd.f32 %v667, %v1293
        %v1295 = vpop.f32.mrf.mxu0
        %v1296 = vadd.f32 %v672, %v1295
        %v1297 = vpop.f32.mrf.mxu0
        %v1298 = vadd.f32 %v672, %v1297
        %1299 = vmatprep.mubr.bf16.mxu0 0
        %1300 = vmatmul.mubr.bf16.gmra.mxu0 %v962
        %v1301 = vpop.f32.mrf.mxu0
        %v1302 = vadd.f32 %v677, %v1301
        %v1303 = vpop.f32.mrf.mxu0
        %v1304 = vadd.f32 %v677, %v1303
        %v1305 = vpop.f32.mrf.mxu0
        %v1306 = vadd.f32 %v682, %v1305
        %v1307 = vpop.f32.mrf.mxu0
        %v1308 = vadd.f32 %v682, %v1307
        %1309 = vmatprep.mubr.bf16.mxu0 0
        %1310 = vmatmul.mubr.bf16.gmra.mxu0 %v965
        %v1311 = vpop.f32.mrf.mxu0
        %v1312 = vadd.f32 %v687, %v1311
        %v1313 = vpop.f32.mrf.mxu0
        %v1314 = vadd.f32 %v687, %v1313
        %v1315 = vpop.f32.mrf.mxu0
        %v1316 = vadd.f32 %v692, %v1315
        %v1317 = vpop.f32.mrf.mxu0
        %v1318 = vadd.f32 %v692, %v1317
        %1319 = vmatprep.mubr.bf16.mxu0 0
        %1320 = vmatmul.mubr.bf16.gmra.mxu0 %v968
        %v1321 = vpop.f32.mrf.mxu0
        %v1322 = vadd.f32 %v697, %v1321
        %v1323 = vpop.f32.mrf.mxu0
        %v1324 = vadd.f32 %v697, %v1323
        %v1325 = vpop.f32.mrf.mxu0
        %v1326 = vadd.f32 %v702, %v1325
        %v1327 = vpop.f32.mrf.mxu0
        %v1328 = vadd.f32 %v702, %v1327
        %1329 = vdwg.mxu0
        %v1330 = vmax.f32 %v1012, 0.0
        %v1331 = vmax.f32 %v1014, 0.0
        %v1332 = vmax.f32 %v1016, 0.0
        %v1333 = vmax.f32 %v1018, 0.0
        %v1334 = vmax.f32 %v1022, 0.0
        %v1335 = vmax.f32 %v1024, 0.0
        %v1336 = vmax.f32 %v1026, 0.0
        %v1337 = vmax.f32 %v1028, 0.0
        %v1338 = vmax.f32 %v1032, 0.0
        %v1339 = vmax.f32 %v1034, 0.0
        %v1340 = vmax.f32 %v1036, 0.0
        %v1341 = vmax.f32 %v1038, 0.0
        %v1342 = vmax.f32 %v1042, 0.0
        %v1343 = vmax.f32 %v1044, 0.0
        %v1344 = vmax.f32 %v1046, 0.0
        %v1345 = vmax.f32 %v1048, 0.0
        %v1346 = vmax.f32 %v1052, 0.0
        %v1347 = vmax.f32 %v1054, 0.0
        %v1348 = vmax.f32 %v1056, 0.0
        %v1349 = vmax.f32 %v1058, 0.0
        %v1350 = vmax.f32 %v1062, 0.0
        %v1351 = vmax.f32 %v1064, 0.0
        %v1352 = vmax.f32 %v1066, 0.0
        %v1353 = vmax.f32 %v1068, 0.0
        %v1354 = vmax.f32 %v1072, 0.0
        %v1355 = vmax.f32 %v1074, 0.0
        %v1356 = vmax.f32 %v1076, 0.0
        %v1357 = vmax.f32 %v1078, 0.0
        %v1358 = vmax.f32 %v1082, 0.0
        %v1359 = vmax.f32 %v1084, 0.0
        %v1360 = vmax.f32 %v1086, 0.0
        %v1361 = vmax.f32 %v1088, 0.0
        %v1362 = vmax.f32 %v1092, 0.0
        %v1363 = vmax.f32 %v1094, 0.0
        %v1364 = vmax.f32 %v1096, 0.0
        %v1365 = vmax.f32 %v1098, 0.0
        %v1366 = vmax.f32 %v1102, 0.0
        %v1367 = vmax.f32 %v1104, 0.0
        %v1368 = vmax.f32 %v1106, 0.0
        %v1369 = vmax.f32 %v1108, 0.0
        %v1370 = vmax.f32 %v1112, 0.0
        %v1371 = vmax.f32 %v1114, 0.0
        %v1372 = vmax.f32 %v1116, 0.0
        %v1373 = vmax.f32 %v1118, 0.0
        %v1374 = vmax.f32 %v1122, 0.0
        %v1375 = vmax.f32 %v1124, 0.0
        %v1376 = vmax.f32 %v1126, 0.0
        %v1377 = vmax.f32 %v1128, 0.0
        %v1378 = vmax.f32 %v1132, 0.0
        %v1379 = vmax.f32 %v1134, 0.0
        %v1380 = vmax.f32 %v1136, 0.0
        %v1381 = vmax.f32 %v1138, 0.0
        %v1382 = vmax.f32 %v1142, 0.0
        %v1383 = vmax.f32 %v1144, 0.0
        %v1384 = vmax.f32 %v1146, 0.0
        %v1385 = vmax.f32 %v1148, 0.0
        %v1386 = vmax.f32 %v1152, 0.0
        %v1387 = vmax.f32 %v1154, 0.0
        %v1388 = vmax.f32 %v1156, 0.0
        %v1389 = vmax.f32 %v1158, 0.0
        %v1390 = vmax.f32 %v1162, 0.0
        %v1391 = vmax.f32 %v1164, 0.0
        %v1392 = vmax.f32 %v1166, 0.0
        %v1393 = vmax.f32 %v1168, 0.0
        %v1394 = vmax.f32 %v1172, 0.0
        %v1395 = vmax.f32 %v1174, 0.0
        %v1396 = vmax.f32 %v1176, 0.0
        %v1397 = vmax.f32 %v1178, 0.0
        %v1398 = vmax.f32 %v1182, 0.0
        %v1399 = vmax.f32 %v1184, 0.0
        %v1400 = vmax.f32 %v1186, 0.0
        %v1401 = vmax.f32 %v1188, 0.0
        %v1402 = vmax.f32 %v1192, 0.0
        %v1403 = vmax.f32 %v1194, 0.0
        %v1404 = vmax.f32 %v1196, 0.0
        %v1405 = vmax.f32 %v1198, 0.0
        %v1406 = vmax.f32 %v1202, 0.0
        %v1407 = vmax.f32 %v1204, 0.0
        %v1408 = vmax.f32 %v1206, 0.0
        %v1409 = vmax.f32 %v1208, 0.0
        %v1410 = vmax.f32 %v1212, 0.0
        %v1411 = vmax.f32 %v1214, 0.0
        %v1412 = vmax.f32 %v1216, 0.0
        %v1413 = vmax.f32 %v1218, 0.0
        %v1414 = vmax.f32 %v1222, 0.0
        %v1415 = vmax.f32 %v1224, 0.0
        %v1416 = vmax.f32 %v1226, 0.0
        %v1417 = vmax.f32 %v1228, 0.0
        %v1418 = vmax.f32 %v1232, 0.0
        %v1419 = vmax.f32 %v1234, 0.0
        %v1420 = vmax.f32 %v1236, 0.0
        %v1421 = vmax.f32 %v1238, 0.0
        %v1422 = vmax.f32 %v1242, 0.0
        %v1423 = vmax.f32 %v1244, 0.0
        %v1424 = vmax.f32 %v1246, 0.0
        %v1425 = vmax.f32 %v1248, 0.0
        %v1426 = vmax.f32 %v1252, 0.0
        %v1427 = vmax.f32 %v1254, 0.0
        %v1428 = vmax.f32 %v1256, 0.0
        %v1429 = vmax.f32 %v1258, 0.0
        %v1430 = vmax.f32 %v1262, 0.0
        %v1431 = vmax.f32 %v1264, 0.0
        %v1432 = vmax.f32 %v1266, 0.0
        %v1433 = vmax.f32 %v1268, 0.0
        %v1434 = vmax.f32 %v1272, 0.0
        %v1435 = vmax.f32 %v1274, 0.0
        %v1436 = vmax.f32 %v1276, 0.0
        %v1437 = vmax.f32 %v1278, 0.0
        %v1438 = vmax.f32 %v1282, 0.0
        %v1439 = vmax.f32 %v1284, 0.0
        %v1440 = vmax.f32 %v1286, 0.0
        %v1441 = vmax.f32 %v1288, 0.0
        %v1442 = vmax.f32 %v1292, 0.0
        %v1443 = vmax.f32 %v1294, 0.0
        %v1444 = vmax.f32 %v1296, 0.0
        %v1445 = vmax.f32 %v1298, 0.0
        %v1446 = vmax.f32 %v1302, 0.0
        %v1447 = vmax.f32 %v1304, 0.0
        %v1448 = vmax.f32 %v1306, 0.0
        %v1449 = vmax.f32 %v1308, 0.0
        %v1450 = vmax.f32 %v1312, 0.0
        %v1451 = vmax.f32 %v1314, 0.0
        %v1452 = vmax.f32 %v1316, 0.0
        %v1453 = vmax.f32 %v1318, 0.0
        %v1454 = vmax.f32 %v1322, 0.0
        %v1455 = vmax.f32 %v1324, 0.0
        %v1456 = vmax.f32 %v1326, 0.0
        %v1457 = vmax.f32 %v1328, 0.0
        %v1458 = vld [vmem:[%s3] sm:$0xff]
        %v1459 = vld [vmem:[%s3 + $0x8] sm:$0xff]
        %v1460 = vld [vmem:[%s3 + $0x10] sm:$0xff]
        %v1461 = vld [vmem:[%s3 + $0x18] sm:$0xff]
        %v1462 = vld [vmem:[%s3 + $0x20] sm:$0xff]
        %v1463 = vld [vmem:[%s3 + $0x28] sm:$0xff]
        %v1464 = vld [vmem:[%s3 + $0x30] sm:$0xff]
        %v1465 = vld [vmem:[%s3 + $0x38] sm:$0xff]
        %v1466 = vpack.c.bf16 %v1332, %v1330
        %v1467 = vpack.c.bf16 %v1333, %v1331
        %v1468 = vpack.c.bf16 %v1336, %v1334
        %v1469 = vpack.c.bf16 %v1337, %v1335
        %v1470 = vpack.c.bf16 %v1340, %v1338
        %v1471 = vpack.c.bf16 %v1341, %v1339
        %v1472 = vpack.c.bf16 %v1344, %v1342
        %v1473 = vpack.c.bf16 %v1345, %v1343
        %v1474 = vpack.c.bf16 %v1348, %v1346
        %v1475 = vpack.c.bf16 %v1349, %v1347
        %v1476 = vpack.c.bf16 %v1352, %v1350
        %v1477 = vpack.c.bf16 %v1353, %v1351
        %v1478 = vpack.c.bf16 %v1356, %v1354
        %v1479 = vpack.c.bf16 %v1357, %v1355
        %v1480 = vpack.c.bf16 %v1360, %v1358
        %v1481 = vpack.c.bf16 %v1361, %v1359
        %v1482 = vpack.c.bf16 %v1364, %v1362
        %v1483 = vpack.c.bf16 %v1365, %v1363
        %v1484 = vpack.c.bf16 %v1368, %v1366
        %v1485 = vpack.c.bf16 %v1369, %v1367
        %v1486 = vpack.c.bf16 %v1372, %v1370
        %v1487 = vpack.c.bf16 %v1373, %v1371
        %v1488 = vpack.c.bf16 %v1376, %v1374
        %v1489 = vpack.c.bf16 %v1377, %v1375
        %v1490 = vpack.c.bf16 %v1380, %v1378
        %v1491 = vpack.c.bf16 %v1381, %v1379
        %v1492 = vpack.c.bf16 %v1384, %v1382
        %v1493 = vpack.c.bf16 %v1385, %v1383
        %v1494 = vpack.c.bf16 %v1388, %v1386
        %v1495 = vpack.c.bf16 %v1389, %v1387
        %v1496 = vpack.c.bf16 %v1392, %v1390
        %v1497 = vpack.c.bf16 %v1393, %v1391
        %v1498 = vpack.c.bf16 %v1396, %v1394
        %v1499 = vpack.c.bf16 %v1397, %v1395
        %v1500 = vpack.c.bf16 %v1400, %v1398
        %v1501 = vpack.c.bf16 %v1401, %v1399
        %v1502 = vpack.c.bf16 %v1404, %v1402
        %v1503 = vpack.c.bf16 %v1405, %v1403
        %v1504 = vpack.c.bf16 %v1408, %v1406
        %v1505 = vpack.c.bf16 %v1409, %v1407
        %v1506 = vpack.c.bf16 %v1412, %v1410
        %v1507 = vpack.c.bf16 %v1413, %v1411
        %v1508 = vpack.c.bf16 %v1416, %v1414
        %v1509 = vpack.c.bf16 %v1417, %v1415
        %v1510 = vpack.c.bf16 %v1420, %v1418
        %v1511 = vpack.c.bf16 %v1421, %v1419
        %v1512 = vpack.c.bf16 %v1424, %v1422
        %v1513 = vpack.c.bf16 %v1425, %v1423
        %v1514 = vpack.c.bf16 %v1428, %v1426
        %v1515 = vpack.c.bf16 %v1429, %v1427
        %v1516 = vpack.c.bf16 %v1432, %v1430
        %v1517 = vpack.c.bf16 %v1433, %v1431
        %v1518 = vpack.c.bf16 %v1436, %v1434
        %v1519 = vpack.c.bf16 %v1437, %v1435
        %v1520 = vpack.c.bf16 %v1440, %v1438
        %v1521 = vpack.c.bf16 %v1441, %v1439
        %v1522 = vpack.c.bf16 %v1444, %v1442
        %v1523 = vpack.c.bf16 %v1445, %v1443
        %v1524 = vpack.c.bf16 %v1448, %v1446
        %v1525 = vpack.c.bf16 %v1449, %v1447
        %v1526 = vpack.c.bf16 %v1452, %v1450
        %v1527 = vpack.c.bf16 %v1453, %v1451
        %v1528 = vpack.c.bf16 %v1456, %v1454
        %v1529 = vpack.c.bf16 %v1457, %v1455
        %v1530 = vld [vmem:[%s4] sm:$0xff]
        %v1531 = vld [vmem:[%s4 + $0x8] sm:$0xff]
        %v1532 = vld [vmem:[%s4 + $0x10] sm:$0xff]
        %v1533 = vld [vmem:[%s4 + $0x18] sm:$0xff]
        %1535 = vset.pattern.permute.xlu0 0
        %1536 = vperm.xlu0 %1535, %v1530
        %v1537 = vpop.permute.xlu0 %1536
        %1540 = vset.pattern.permute.xlu0 0
        %1541 = vperm.xlu0 %1540, %v1531
        %v1542 = vpop.permute.xlu0 %1541
        %1545 = vset.pattern.permute.xlu0 0
        %1546 = vperm.xlu0 %1545, %v1532
        %v1547 = vpop.permute.xlu0 %1546
        %1550 = vset.pattern.permute.xlu0 0
        %1551 = vperm.xlu0 %1550, %v1533
        %v1552 = vpop.permute.xlu0 %1551
        %v1562 = vunpack.c.l.b16 %v1458
        %v1563 = vunpack.c.h.b16 %v1458
        %v1564 = vunpack.c.l.b16 %v1459
        %v1565 = vunpack.c.h.b16 %v1459
        %v1566 = vunpack.c.l.b16 %v1460
        %v1567 = vunpack.c.h.b16 %v1460
        %v1568 = vunpack.c.l.b16 %v1461
        %v1569 = vunpack.c.h.b16 %v1461
        %v1570 = vunpack.c.l.b16 %v1462
        %v1571 = vunpack.c.h.b16 %v1462
        %v1572 = vunpack.c.l.b16 %v1463
        %v1573 = vunpack.c.h.b16 %v1463
        %v1574 = vunpack.c.l.b16 %v1464
        %v1575 = vunpack.c.h.b16 %v1464
        %v1576 = vunpack.c.l.b16 %v1465
        %v1577 = vunpack.c.h.b16 %v1465
        %v1578 = vpack.c.b16 %v1566, %v1562
        %v1579 = vpack.c.b16 %v1567, %v1563
        %v1580 = vpack.c.b16 %v1568, %v1564
        %v1581 = vpack.c.b16 %v1569, %v1565
        %v1582 = vpack.c.b16 %v1574, %v1570
        %v1583 = vpack.c.b16 %v1575, %v1571
        %v1584 = vpack.c.b16 %v1576, %v1572
        %v1585 = vpack.c.b16 %v1577, %v1573
        %1594 = vmatprep.subr.bf16.mxu0 %v1481
        %1595 = vmatpush1.bf16.msra.mxu0 %v1480
        %1596 = vmatprep.subr.bf16.mxu0 %v1479
        %1597 = vmatpush1.bf16.msra.mxu0 %v1478
        %1598 = vmatprep.subr.bf16.mxu0 %v1477
        %1599 = vmatpush1.bf16.msra.mxu0 %v1476
        %1600 = vmatprep.subr.bf16.mxu0 %v1475
        %1601 = vmatpush1.bf16.msra.mxu0 %v1474
        %1602 = vmatprep.subr.bf16.mxu0 %v1473
        %1603 = vmatpush1.bf16.msra.mxu0 %v1472
        %1604 = vmatprep.subr.bf16.mxu0 %v1471
        %1605 = vmatpush1.bf16.msra.mxu0 %v1470
        %1606 = vmatprep.subr.bf16.mxu0 %v1469
        %1607 = vmatpush1.bf16.msra.mxu0 %v1468
        %1608 = vmatprep.subr.bf16.mxu0 %v1467
        %1609 = vmatpush1.bf16.msra.mxu0 %v1466
        %1610 = vmatprep.subr.bf16.mxu0 %v1497
        %1611 = vmatpush2.bf16.msra.mxu0 %v1496
        %1612 = vmatprep.subr.bf16.mxu0 %v1495
        %1613 = vmatpush2.bf16.msra.mxu0 %v1494
        %1614 = vmatprep.subr.bf16.mxu0 %v1493
        %1615 = vmatpush2.bf16.msra.mxu0 %v1492
        %1616 = vmatprep.subr.bf16.mxu0 %v1491
        %1617 = vmatpush2.bf16.msra.mxu0 %v1490
        %1618 = vmatprep.subr.bf16.mxu0 %v1489
        %1619 = vmatpush2.bf16.msra.mxu0 %v1488
        %1620 = vmatprep.subr.bf16.mxu0 %v1487
        %1621 = vmatpush2.bf16.msra.mxu0 %v1486
        %1622 = vmatprep.subr.bf16.mxu0 %v1485
        %1623 = vmatpush2.bf16.msra.mxu0 %v1484
        %1624 = vmatprep.subr.bf16.mxu0 %v1483
        %1625 = vmatpush2.bf16.msra.mxu0 %v1482
        %1626 = vmatprep.mubr.bf16.mxu0 %v1579
        %1627 = vmatmul.mubr.bf16.gmra.mxu0 %v1578
        %v1628 = vpop.f32.mrf.mxu0
        %v1629 = vadd.f32 %v1537, %v1628
        %v1630 = vpop.f32.mrf.mxu0
        %v1631 = vadd.f32 %v1537, %v1630
        %v1632 = vpop.f32.mrf.mxu0
        %v1633 = vadd.f32 %v1542, %v1632
        %v1634 = vpop.f32.mrf.mxu0
        %v1635 = vadd.f32 %v1542, %v1634
        %1636 = vmatprep.mubr.bf16.mxu0 %v1583
        %1637 = vmatmul.mubr.bf16.gmra.mxu0 %v1582
        %v1638 = vpop.f32.mrf.mxu0
        %v1639 = vadd.f32 %v1547, %v1638
        %v1640 = vpop.f32.mrf.mxu0
        %v1641 = vadd.f32 %v1547, %v1640
        %v1642 = vpop.f32.mrf.mxu0
        %v1643 = vadd.f32 %v1552, %v1642
        %v1644 = vpop.f32.mrf.mxu0
        %v1645 = vadd.f32 %v1552, %v1644
        %1646 = vdwg.mxu0
        %1647 = vmatprep.subr.bf16.mxu0 %v1513
        %1648 = vmatpush1.bf16.msra.mxu0 %v1512
        %1649 = vmatprep.subr.bf16.mxu0 %v1511
        %1650 = vmatpush1.bf16.msra.mxu0 %v1510
        %1651 = vmatprep.subr.bf16.mxu0 %v1509
        %1652 = vmatpush1.bf16.msra.mxu0 %v1508
        %1653 = vmatprep.subr.bf16.mxu0 %v1507
        %1654 = vmatpush1.bf16.msra.mxu0 %v1506
        %1655 = vmatprep.subr.bf16.mxu0 %v1505
        %1656 = vmatpush1.bf16.msra.mxu0 %v1504
        %1657 = vmatprep.subr.bf16.mxu0 %v1503
        %1658 = vmatpush1.bf16.msra.mxu0 %v1502
        %1659 = vmatprep.subr.bf16.mxu0 %v1501
        %1660 = vmatpush1.bf16.msra.mxu0 %v1500
        %1661 = vmatprep.subr.bf16.mxu0 %v1499
        %1662 = vmatpush1.bf16.msra.mxu0 %v1498
        %1663 = vmatprep.subr.bf16.mxu0 %v1529
        %1664 = vmatpush2.bf16.msra.mxu0 %v1528
        %1665 = vmatprep.subr.bf16.mxu0 %v1527
        %1666 = vmatpush2.bf16.msra.mxu0 %v1526
        %1667 = vmatprep.subr.bf16.mxu0 %v1525
        %1668 = vmatpush2.bf16.msra.mxu0 %v1524
        %1669 = vmatprep.subr.bf16.mxu0 %v1523
        %1670 = vmatpush2.bf16.msra.mxu0 %v1522
        %1671 = vmatprep.subr.bf16.mxu0 %v1521
        %1672 = vmatpush2.bf16.msra.mxu0 %v1520
        %1673 = vmatprep.subr.bf16.mxu0 %v1519
        %1674 = vmatpush2.bf16.msra.mxu0 %v1518
        %1675 = vmatprep.subr.bf16.mxu0 %v1517
        %1676 = vmatpush2.bf16.msra.mxu0 %v1516
        %1677 = vmatprep.subr.bf16.mxu0 %v1515
        %1678 = vmatpush2.bf16.msra.mxu0 %v1514
        %1679 = vmatprep.mubr.bf16.mxu0 %v1581
        %1680 = vmatmul.mubr.bf16.gmra.mxu0 %v1580
        %v1681 = vpop.f32.mrf.mxu0
        %v1682 = vadd.f32 %v1629, %v1681
        %v1683 = vpop.f32.mrf.mxu0
        %v1684 = vadd.f32 %v1631, %v1683
        %v1685 = vpop.f32.mrf.mxu0
        %v1686 = vadd.f32 %v1633, %v1685
        %v1687 = vpop.f32.mrf.mxu0
        %v1688 = vadd.f32 %v1635, %v1687
        %1689 = vmatprep.mubr.bf16.mxu0 %v1585
        %1690 = vmatmul.mubr.bf16.gmra.mxu0 %v1584
        %v1691 = vpop.f32.mrf.mxu0
        %v1692 = vadd.f32 %v1639, %v1691
        %v1693 = vpop.f32.mrf.mxu0
        %v1694 = vadd.f32 %v1641, %v1693
        %v1695 = vpop.f32.mrf.mxu0
        %v1696 = vadd.f32 %v1643, %v1695
        %v1697 = vpop.f32.mrf.mxu0
        %v1698 = vadd.f32 %v1645, %v1697
        %1699 = vdwg.mxu0
        %v1700 = vmax.f32 %v1682, 0.0
        %v1701 = vmax.f32 %v1684, 0.0
        %v1702 = vmax.f32 %v1686, 0.0
        %v1703 = vmax.f32 %v1688, 0.0
        %v1704 = vmax.f32 %v1692, 0.0
        %v1705 = vmax.f32 %v1694, 0.0
        %v1706 = vmax.f32 %v1696, 0.0
        %v1707 = vmax.f32 %v1698, 0.0
        %1708 = vst [vmem:[%s242] sm:$0xff] %v1700
        %1709 = vst [vmem:[%s242 + $0x8] sm:$0xff] %v1701
        %1710 = vst [vmem:[%s242 + $0x10] sm:$0xff] %v1702
        %1711 = vst [vmem:[%s242 + $0x18] sm:$0xff] %v1703
        %1712 = vst [vmem:[%s242 + $0x20] sm:$0xff] %v1704
        %1713 = vst [vmem:[%s242 + $0x28] sm:$0xff] %v1705
        %1714 = vst [vmem:[%s242 + $0x30] sm:$0xff] %v1706
        %1715 = vst [vmem:[%s242 + $0x38] sm:$0xff] %v1707
        %s1716 = sand.u32 %s153, 1
        %s1717 = scalar_lea.sflag [#allocation3], %s1716
        %s1718 = sand.u32 %s153, 1
        %s1719 = smul.addr %s1718, 64
        %s1720 = scalar_lea.vmem [#allocation2], %s1719
        // Predicated region
        $region41: #{tpu_custom_call.1} parent=39 // pred_check
          %p1721 = pneg %p163
        $region42: #{tpu_custom_call.1} parent=39 // pred_check_branch
          %1723 = sbr.rel (%p1721) target = $region44
        $region43: #{tpu_custom_call.1} parent=39 // pred_region
          %s1724 = smul.u32 2, %s24
          %s1726 = ssub.s32 1024, 1024
          %1727 = vsyncadd %s1717, %s1726
          %s1728 = smul.addr %s23, 8
          %s1729 = sadd.s32 %s1724, %s1728
          %s1730 = smul.addr %s1729, 128
          %s1731 = scalar_lea.hbm %s5, %s1730
          %s1732 = sshll.u32 %s1720, 4
          %s1733 = int_to_ptr.vmem [resolvable:$true] %s1732
          %1738 = dma.vmem_to_hbm [thread:$0]  %s1733, 1024, %s1731, %s1717, 256, 256, 16
        $region44: #{tpu_custom_call.1} parent=39 // pred_fallthru
          _
      $region40: #{tpu_custom_call.1} parent=5 // pred_fallthru
        _
      %p1739 = scmp.le.s32.totalorder 2, %s14
      // Predicated region
      $region45: #{tpu_custom_call.1} parent=5 // pred_check
        %p1740 = pneg %p1739
      $region46: #{tpu_custom_call.1} parent=5 // pred_check_branch
        %1742 = sbr.rel (%p1740) target = $region48
      $region47: #{tpu_custom_call.1} parent=5 // pred_region
        %s1743 = ssub.s32 %s14, 2
        // Predicated region
        $region49: #{tpu_custom_call.1} parent=47 // pred_check
          %p1744 = pneg %p169
        $region50: #{tpu_custom_call.1} parent=47 // pred_check_branch
          %1746 = sbr.rel (%p1744) target = $region52
        $region51: #{tpu_custom_call.1} parent=47 // pred_region
          %s1747 = sand.u32 %s154, 1
          %s1748 = scalar_lea.sflag [#allocation3], %s1747
          %s1749 = sand.u32 %s154, 1
          %s1750 = smul.addr %s1749, 64
          %s1751 = scalar_lea.vmem [#allocation2], %s1750
          %1752 = dma.done %s1748, 1024
        $region52: #{tpu_custom_call.1} parent=47 // pred_fallthru
          _
      $region48: #{tpu_custom_call.1} parent=5 // pred_fallthru
        _
    $region6: #{tpu_custom_call.1} parent=1 // loop_footer
      %s18 = sadd.s32 1, %s14
    $region7: #{tpu_custom_call.1} parent=1 // loop_footer_branch
      %13 = sbr.rel target = $region3
    $region8: #{tpu_custom_call.1} parent=1 // loop_exit
      _
    %1753 = vsyncpa [#allocation3], 1
    %s1754 = scalar_lea.sflag [#allocation3], 1
    %1755 = vsyncpa %s1754, 1

</llo_original>
